<compile_context>
chip_gen: v7x
topology: tpu7x:2x2x1
jax: 0.10.0
libtpu: 0.0.40
codegen_flags: <defaults>
</compile_context>

<pallas_src>
import functools

import jax
import jax.numpy as jnp
from jax.experimental import pallas as pl
from jax.experimental.pallas import tpu as pltpu


def resnet_kernel(packed_ref, wfront_ref, blin_ref,
                  w1_ref, b1_ref, w2_ref, b2_ref, wout_ref, bout_ref,
                  out_ref, *, dd, n_blocks, h_real, eps, compute_dtype):
    f32 = jnp.float32

    # ---- single packed input tile: [idx bit-pattern | x_c] ----
    packed_f = packed_ref[...]                              # (TN, dd+dc) f32
    packed_i = pltpu.bitcast(packed_f, jnp.int32)           # same bits, int view
    idx = packed_i[:, :dd]                                  # (TN, dd) pre-offset indices
    xc = packed_f[:, dd:]                                   # (TN, dc) continuous features

    tile_n = packed_f.shape[0]
    dc = packed_f.shape[1] - dd
    k_front, h_pad = wfront_ref.shape
    v_total = k_front - dc

    # ---- fused front end: one MXU call for (embedding-sum + continuous linear) ----
    # front = [multi_hot | x_c], built with iota compares / splices (no lane
    # concatenate needed); multi-hot is exact in bf16 (0/1 sums of dd<=3).
    # TODO(synk): for large V_total replace the dense multi-hot with a
    # scalar-prefetched row gather (emb kept in HBM + per-tile DMA).
    col_iota = jax.lax.broadcasted_iota(jnp.int32, (tile_n, k_front), 1)
    front = (col_iota == idx[:, 0:1]).astype(compute_dtype)
    for j in range(1, dd):                                   # dd is small & static
        front = front + (col_iota == idx[:, j:j + 1]).astype(compute_dtype)
    for c in range(dc):                                      # splice x_c into lanes
        front = front + ((col_iota == (v_total + c)).astype(f32)
                         * xc[:, c:c + 1]).astype(compute_dtype)
    x = jnp.dot(front, wfront_ref[...], preferred_element_type=f32) + blin_ref[...]

    # ---- residual blocks: LN (affine folded into w1/b1) -> lin -> relu -> lin -> relu -> add
    # Padded lanes of x are provably zero (all padded weight rows/cols and bias
    # lanes are zero), so unmasked E[x^2]-mu^2 statistics over h_pad lanes are
    # exact for the real H lanes.  Stats stay in f32, eps retained.
    inv_h = f32(1.0 / h_real)
    for l in range(n_blocks):                                # n_blocks small & static
        s1 = jnp.sum(x, axis=-1, keepdims=True)
        s2 = jnp.sum(x * x, axis=-1, keepdims=True)
        mu = s1 * inv_h
        var = s2 * inv_h - mu * mu
        zn = (x - mu) * jax.lax.rsqrt(var + eps)
        # zn's padded lanes hold -mu*rsqrt(...) but w1's padded rows are zero,
        # so they contribute nothing; z's padded lanes come out zero again.
        z = jnp.dot(zn.astype(compute_dtype), w1_ref[l],
                    preferred_element_type=f32) + b1_ref[l:l + 1, :]
        z = jnp.maximum(z, 0.0)
        z = jnp.dot(z.astype(compute_dtype), w2_ref[l],
                    preferred_element_type=f32) + b2_ref[l:l + 1, :]
        z = jnp.maximum(z, 0.0)
        x = x + z

    # ---- final projection: narrow (o_pad) output slab (16x less writeback than 128)
    out_ref[...] = jnp.dot(x.astype(compute_dtype), wout_ref[...],
                           preferred_element_type=f32) + bout_ref[...]


def _pad_to(a, shape):
    pads = [(0, t - s) for s, t in zip(a.shape, shape)]
    return jnp.pad(a, pads)


def prepare_params(params, *, h_pad, o_pad, matmul_dtype):
    """Fold LN affine into the first block linear, stack [emb ; w_lin] into one
    front-end weight, zero-pad to padded shapes, cast MXU operands."""
    (emb, w_lin, b_lin, gammas, betas, w1s, b1s, w2s, b2s, w_out, b_out) = params
    nb = w1s.shape[0]

    # (zn*gamma + beta) @ W1 + b1 == zn @ (diag(gamma) @ W1) + (beta @ W1 + b1)
    w1_f = gammas[:, :, None] * w1s
    b1_f = jnp.einsum('lh,lho->lo', betas, w1s) + b1s

    w_front = jnp.concatenate([emb, w_lin], axis=0)          # (V_TOTAL + DC, H)

    wfront_p = _pad_to(w_front, (w_front.shape[0], h_pad)).astype(matmul_dtype)
    blin_p = _pad_to(b_lin, (1, h_pad)).astype(jnp.float32)
    w1_p = _pad_to(w1_f, (nb, h_pad, h_pad)).astype(matmul_dtype)
    b1_p = _pad_to(b1_f, (nb, h_pad)).astype(jnp.float32)
    w2_p = _pad_to(w2s, (nb, h_pad, h_pad)).astype(matmul_dtype)
    b2_p = _pad_to(b2s, (nb, h_pad)).astype(jnp.float32)
    wout_p = _pad_to(w_out, (h_pad, o_pad)).astype(matmul_dtype)
    bout_p = _pad_to(b_out, (1, o_pad)).astype(jnp.float32)
    return (wfront_p, blin_p, w1_p, b1_p, w2_p, b2_p, wout_p, bout_p)


def resnet_forward(idx_off, x_c, params, *, n_blocks, eps=1e-5,
                   tile_n=512, num_tensorcores=1, matmul_dtype=jnp.bfloat16):
    emb, w_out = params[0], params[9]
    n, dd = idx_off.shape
    dc = x_c.shape[1]
    h = emb.shape[1]
    o = w_out.shape[1]

    # Lane-dense hidden dim (don't over-pad past 128: real H=32, latency-bound).
    h_pad = max(128, -(-h // 128) * 128)
    # Narrow output pad: masked vst but far less HBM writeback than 128 lanes.
    o_pad = -(-o // 8) * 8

    (wfront_p, blin_p, w1_p, b1_p, w2_p, b2_p, wout_p, bout_p) = prepare_params(
        params, h_pad=h_pad, o_pad=o_pad, matmul_dtype=matmul_dtype)

    # Pack idx (bit-pattern preserved) + x_c into one f32 slab -> one input DMA
    # per grid step. Padded batch rows decode to idx=0 (read embedding row 0);
    # harmless because those rows are sliced off and nothing reduces over batch.
    packed = jnp.concatenate(
        [jax.lax.bitcast_convert_type(idx_off.astype(jnp.int32), jnp.float32),
         x_c.astype(jnp.float32)], axis=1)                  # (N, dd+dc)

    # Batch tiling: few big tiles (per-step overhead ~0.35us dominates tiny
    # tiles).  grid is forced to a multiple of `num_tensorcores` so that on
    # v7x (2 TCs, pass num_tensorcores=2) the "parallel" axis feeds both cores;
    # on v5e/v6e (1 TC) small batches collapse to a single grid step.
    num_tensorcores = max(1, num_tensorcores)
    tiles = max(num_tensorcores, -(-n // max(tile_n, 8)))
    tiles = -(-tiles // num_tensorcores) * num_tensorcores
    per_tile = -(-n // tiles)
    tile_n = -(-per_tile // 8) * 8                           # sublane multiple
    n_pad = tiles * tile_n
    packed_p = _pad_to(packed, (n_pad, dd + dc))
    grid = (tiles,)

    def resident(a):
        # Constant index map -> block stays VMEM-resident across grid steps
        # (no per-step re-DMA). pl.Buffered(1) skipped: ~0.4 MiB total weights.
        zeros = (0,) * a.ndim
        return pl.BlockSpec(a.shape, lambda i, z=zeros: z)

    in_specs = [
        pl.BlockSpec((tile_n, dd + dc), lambda i: (i, 0)),   # packed [idx|x_c]
        resident(wfront_p),
        resident(blin_p),
        resident(w1_p),
        resident(b1_p),
        resident(w2_p),
        resident(b2_p),
        resident(wout_p),
        resident(bout_p),
    ]
    out_spec = pl.BlockSpec((tile_n, o_pad), lambda i: (i, 0))

    kernel = functools.partial(resnet_kernel, dd=dd, n_blocks=n_blocks,
                               h_real=h, eps=eps, compute_dtype=matmul_dtype)

    out_p = pl.pallas_call(
        kernel,
        out_shape=jax.ShapeDtypeStruct((n_pad, o_pad), jnp.float32),
        grid=grid,
        in_specs=in_specs,
        out_specs=out_spec,
        compiler_params=pltpu.CompilerParams(
            dimension_semantics=("parallel",)),
    )(packed_p, wfront_p, blin_p, w1_p, b1_p, w2_p, b2_p, wout_p, bout_p)
    return out_p[:n, :o]


def ref_forward(idx_off, x_c, params, *, n_blocks, eps=1e-5):
    """Pure-JAX reference matching the torch forward semantics."""
    (emb, w_lin, b_lin, gammas, betas, w1s, b1s, w2s, b2s, w_out, b_out) = params
    x_d = emb[idx_off].sum(axis=1)
    x = x_d + x_c @ w_lin + b_lin
    for l in range(n_blocks):
        mu = x.mean(-1, keepdims=True)
        var = ((x - mu) ** 2).mean(-1, keepdims=True)
        z = (x - mu) / jnp.sqrt(var + eps) * gammas[l] + betas[l]
        z = jnp.maximum(z @ w1s[l] + b1s[l], 0.0)
        z = jnp.maximum(z @ w2s[l] + b2s[l], 0.0)
        x = x + z
    return x @ w_out + b_out


if __name__ == "__main__":
    # shapes consistent with the module: batch=64, 3 categorical columns,
    # 4 continuous columns, hidden_dim=32, output_dim=2, layer=3 (2 res blocks)
    N, DD, DC, H, O = 64, 3, 4, 32, 2
    LAYER = 3
    N_BLOCKS = LAYER - 1
    vocab_sizes = [5, 7, 3]                     # (max_values[i] + 1) per column
    V_TOTAL = sum(vocab_sizes)

    key = jax.random.PRNGKey(0)
    ks = jax.random.split(key, 16)

    # data
    x_d_cols = [jax.random.randint(ks[j], (N, 1), 0, vocab_sizes[j], jnp.int32)
                for j in range(DD)]
    x_d = jnp.concatenate(x_d_cols, axis=1)                       # (N, DD)
    x_c = jax.random.normal(ks[3], (N, DC), jnp.float32)          # (N, DC)

    # offsets into the concatenated embedding table
    offsets = jnp.asarray(
        [0] + list(jnp.cumsum(jnp.asarray(vocab_sizes))[:-1]), jnp.int32)
    idx_off = x_d + offsets[None, :]                              # (N, DD)

    # deterministic parameters (shapes mirror the torch module's __init__;
    # linear weights stored as (in_features, out_features) == W.T)
    emb = 0.1 * jax.random.normal(ks[4], (V_TOTAL, H), jnp.float32)
    w_lin = 0.1 * jax.random.normal(ks[5], (DC, H), jnp.float32)
    b_lin = 0.1 * jax.random.normal(ks[6], (1, H), jnp.float32)
    gammas = 1.0 + 0.05 * jax.random.normal(ks[7], (N_BLOCKS, H), jnp.float32)
    betas = 0.05 * jax.random.normal(ks[8], (N_BLOCKS, H), jnp.float32)
    w1s = 0.1 * jax.random.normal(ks[9], (N_BLOCKS, H, H), jnp.float32)
    b1s = 0.1 * jax.random.normal(ks[10], (N_BLOCKS, H), jnp.float32)
    w2s = 0.1 * jax.random.normal(ks[11], (N_BLOCKS, H, H), jnp.float32)
    b2s = 0.1 * jax.random.normal(ks[12], (N_BLOCKS, H), jnp.float32)
    w_out = 0.1 * jax.random.normal(ks[13], (H, O), jnp.float32)
    b_out = 0.1 * jax.random.normal(ks[14], (1, O), jnp.float32)

    params = (emb, w_lin, b_lin, gammas, betas, w1s, b1s, w2s, b2s,
              w_out, b_out)

    ref = ref_forward(idx_off, x_c, params, n_blocks=N_BLOCKS)

    # Default path: bf16 MXU operands / f32 accumulation, single tile (grid=1).
    out = resnet_forward(idx_off, x_c, params, n_blocks=N_BLOCKS)
    out = jax.block_until_ready(out)
    assert out.shape == (N, O)
    assert jnp.allclose(out, ref, rtol=2e-2, atol=2e-2), (
        f"bf16 max abs err {jnp.max(jnp.abs(out - ref))}")

    # f32 MXU operands: tight numerical check of the fused/unmasked-LN math.
    out_f32 = resnet_forward(idx_off, x_c, params, n_blocks=N_BLOCKS,
                             matmul_dtype=jnp.float32)
    out_f32 = jax.block_until_ready(out_f32)
    assert jnp.allclose(out_f32, ref, rtol=1e-4, atol=1e-4), (
        f"f32 max abs err {jnp.max(jnp.abs(out_f32 - ref))}")

    # Multi-tile path (grid parity 2, as used on v7x megacore): exercises the
    # batch pipeline with more than one grid step.
    out_mc = resnet_forward(idx_off, x_c, params, n_blocks=N_BLOCKS,
                            num_tensorcores=2, matmul_dtype=jnp.float32)
    out_mc = jax.block_until_ready(out_mc)
    assert jnp.allclose(out_mc, ref, rtol=1e-4, atol=1e-4), (
        f"multi-tile max abs err {jnp.max(jnp.abs(out_mc - ref))}")

    print("KERNEL_OK")
</pallas_src>

<mosaic_0001>
module attributes {stable_mosaic.version = 11 : i64} {
  func.func @resnet_kernel(%arg0: i32, %arg1: memref<64x7xf32, #tpu.memory_space<vmem>>, %arg2: memref<19x128xbf16, #tpu.memory_space<vmem>>, %arg3: memref<1x128xf32, #tpu.memory_space<vmem>>, %arg4: memref<2x128x128xbf16, #tpu.memory_space<vmem>>, %arg5: memref<2x128xf32, #tpu.memory_space<vmem>>, %arg6: memref<2x128x128xbf16, #tpu.memory_space<vmem>>, %arg7: memref<2x128xf32, #tpu.memory_space<vmem>>, %arg8: memref<128x8xbf16, #tpu.memory_space<vmem>>, %arg9: memref<1x8xf32, #tpu.memory_space<vmem>>, %arg10: memref<64x8xf32, #tpu.memory_space<vmem>>) attributes {dimension_semantics = [#tpu.dimension_semantics<parallel>], iteration_bounds = array<i64: 1>, scalar_prefetch = 0 : i64, scratch_operands = 0 : i64, tpu.core_type = #tpu.core_type<tc>, window_params = [{transform_indices = @transform_0, window_bounds = array<i64: 64, 7>}, {pipeline_mode = #tpu.pipeline_mode<synchronous>, transform_indices = @transform_1, window_bounds = array<i64: 19, 128>}, {pipeline_mode = #tpu.pipeline_mode<synchronous>, transform_indices = @transform_2, window_bounds = array<i64: 1, 128>}, {pipeline_mode = #tpu.pipeline_mode<synchronous>, transform_indices = @transform_3, window_bounds = array<i64: 2, 128, 128>}, {pipeline_mode = #tpu.pipeline_mode<synchronous>, transform_indices = @transform_4, window_bounds = array<i64: 2, 128>}, {pipeline_mode = #tpu.pipeline_mode<synchronous>, transform_indices = @transform_5, window_bounds = array<i64: 2, 128, 128>}, {pipeline_mode = #tpu.pipeline_mode<synchronous>, transform_indices = @transform_6, window_bounds = array<i64: 2, 128>}, {pipeline_mode = #tpu.pipeline_mode<synchronous>, transform_indices = @transform_7, window_bounds = array<i64: 128, 8>}, {pipeline_mode = #tpu.pipeline_mode<synchronous>, transform_indices = @transform_8, window_bounds = array<i64: 1, 8>}, {transform_indices = @transform_9, window_bounds = array<i64: 64, 8>}]} {
    %c0 = arith.constant 0 : index
    %c0_0 = arith.constant 0 : index
    %0 = vector.load %arg1[%c0, %c0_0] : memref<64x7xf32, #tpu.memory_space<vmem>>, vector<64x7xf32>
    %1 = tpu.bitcast %0 : vector<64x7xf32> -> vector<64x7xi32>
    %2 = vector.extract_strided_slice %1 {offsets = [0, 0], sizes = [64, 3], strides = [1, 1]} : vector<64x7xi32> to vector<64x3xi32>
    %3 = vector.extract_strided_slice %0 {offsets = [0, 3], sizes = [64, 4], strides = [1, 1]} : vector<64x7xf32> to vector<64x4xf32>
    %4 = tpu.iota {dimensions = array<i32: 1>} : vector<64x19xi32>
    %5 = vector.extract_strided_slice %2 {offsets = [0, 0], sizes = [64, 1], strides = [1, 1]} : vector<64x3xi32> to vector<64x1xi32>
    %6 = vector.broadcast %5 : vector<64x1xi32> to vector<64x19xi32>
    %7 = arith.cmpi eq, %4, %6 : vector<64x19xi32>
    %8 = arith.extui %7 : vector<64x19xi1> to vector<64x19xi32>
    %9 = arith.sitofp %8 : vector<64x19xi32> to vector<64x19xf32>
    %10 = arith.truncf %9 : vector<64x19xf32> to vector<64x19xbf16>
    %11 = vector.extract_strided_slice %2 {offsets = [0, 1], sizes = [64, 1], strides = [1, 1]} : vector<64x3xi32> to vector<64x1xi32>
    %12 = vector.broadcast %11 : vector<64x1xi32> to vector<64x19xi32>
    %13 = arith.cmpi eq, %4, %12 : vector<64x19xi32>
    %14 = arith.extui %13 : vector<64x19xi1> to vector<64x19xi32>
    %15 = arith.sitofp %14 : vector<64x19xi32> to vector<64x19xf32>
    %16 = arith.truncf %15 : vector<64x19xf32> to vector<64x19xbf16>
    %17 = arith.addf %10, %16 : vector<64x19xbf16>
    %18 = vector.extract_strided_slice %2 {offsets = [0, 2], sizes = [64, 1], strides = [1, 1]} : vector<64x3xi32> to vector<64x1xi32>
    %19 = vector.broadcast %18 : vector<64x1xi32> to vector<64x19xi32>
    %20 = arith.cmpi eq, %4, %19 : vector<64x19xi32>
    %21 = arith.extui %20 : vector<64x19xi1> to vector<64x19xi32>
    %22 = arith.sitofp %21 : vector<64x19xi32> to vector<64x19xf32>
    %23 = arith.truncf %22 : vector<64x19xf32> to vector<64x19xbf16>
    %24 = arith.addf %17, %23 : vector<64x19xbf16>
    %c15_i32 = arith.constant 15 : i32
    %25 = vector.broadcast %c15_i32 : i32 to vector<64x19xi32>
    %26 = arith.cmpi eq, %4, %25 : vector<64x19xi32>
    %27 = arith.extui %26 : vector<64x19xi1> to vector<64x19xi32>
    %28 = arith.sitofp %27 : vector<64x19xi32> to vector<64x19xf32>
    %29 = vector.extract_strided_slice %3 {offsets = [0, 0], sizes = [64, 1], strides = [1, 1]} : vector<64x4xf32> to vector<64x1xf32>
    %30 = vector.broadcast %29 : vector<64x1xf32> to vector<64x19xf32>
    %31 = arith.mulf %28, %30 : vector<64x19xf32>
    %32 = arith.truncf %31 : vector<64x19xf32> to vector<64x19xbf16>
    %33 = arith.addf %24, %32 : vector<64x19xbf16>
    %c16_i32 = arith.constant 16 : i32
    %34 = vector.broadcast %c16_i32 : i32 to vector<64x19xi32>
    %35 = arith.cmpi eq, %4, %34 : vector<64x19xi32>
    %36 = arith.extui %35 : vector<64x19xi1> to vector<64x19xi32>
    %37 = arith.sitofp %36 : vector<64x19xi32> to vector<64x19xf32>
    %38 = vector.extract_strided_slice %3 {offsets = [0, 1], sizes = [64, 1], strides = [1, 1]} : vector<64x4xf32> to vector<64x1xf32>
    %39 = vector.broadcast %38 : vector<64x1xf32> to vector<64x19xf32>
    %40 = arith.mulf %37, %39 : vector<64x19xf32>
    %41 = arith.truncf %40 : vector<64x19xf32> to vector<64x19xbf16>
    %42 = arith.addf %33, %41 : vector<64x19xbf16>
    %c17_i32 = arith.constant 17 : i32
    %43 = vector.broadcast %c17_i32 : i32 to vector<64x19xi32>
    %44 = arith.cmpi eq, %4, %43 : vector<64x19xi32>
    %45 = arith.extui %44 : vector<64x19xi1> to vector<64x19xi32>
    %46 = arith.sitofp %45 : vector<64x19xi32> to vector<64x19xf32>
    %47 = vector.extract_strided_slice %3 {offsets = [0, 2], sizes = [64, 1], strides = [1, 1]} : vector<64x4xf32> to vector<64x1xf32>
    %48 = vector.broadcast %47 : vector<64x1xf32> to vector<64x19xf32>
    %49 = arith.mulf %46, %48 : vector<64x19xf32>
    %50 = arith.truncf %49 : vector<64x19xf32> to vector<64x19xbf16>
    %51 = arith.addf %42, %50 : vector<64x19xbf16>
    %c18_i32 = arith.constant 18 : i32
    %52 = vector.broadcast %c18_i32 : i32 to vector<64x19xi32>
    %53 = arith.cmpi eq, %4, %52 : vector<64x19xi32>
    %54 = arith.extui %53 : vector<64x19xi1> to vector<64x19xi32>
    %55 = arith.sitofp %54 : vector<64x19xi32> to vector<64x19xf32>
    %56 = vector.extract_strided_slice %3 {offsets = [0, 3], sizes = [64, 1], strides = [1, 1]} : vector<64x4xf32> to vector<64x1xf32>
    %57 = vector.broadcast %56 : vector<64x1xf32> to vector<64x19xf32>
    %58 = arith.mulf %55, %57 : vector<64x19xf32>
    %59 = arith.truncf %58 : vector<64x19xf32> to vector<64x19xbf16>
    %60 = arith.addf %51, %59 : vector<64x19xbf16>
    %c0_1 = arith.constant 0 : index
    %c0_2 = arith.constant 0 : index
    %61 = vector.load %arg2[%c0_1, %c0_2] : memref<19x128xbf16, #tpu.memory_space<vmem>>, vector<19x128xbf16>
    %cst = arith.constant dense<0.000000e+00> : vector<64x128xf32>
    %62 = tpu.matmul %60, %61, %cst {dimension_numbers = #tpu.dot_dimension_numbers<[1], [0], [0], [1], [0, 0, 1, 1], [], []>} : vector<64x19xbf16>, vector<19x128xbf16>, vector<64x128xf32> -> vector<64x128xf32>
    %c0_3 = arith.constant 0 : index
    %c0_4 = arith.constant 0 : index
    %63 = vector.load %arg3[%c0_3, %c0_4] : memref<1x128xf32, #tpu.memory_space<vmem>>, vector<1x128xf32>
    %64 = vector.broadcast %63 : vector<1x128xf32> to vector<64x128xf32>
    %65 = arith.addf %62, %64 : vector<64x128xf32>
    %cst_5 = arith.constant dense<0.000000e+00> : vector<64xf32>
    %66 = vector.multi_reduction <add>, %65, %cst_5 [1] : vector<64x128xf32> to vector<64xf32>
    %67 = vector.shape_cast %66 : vector<64xf32> to vector<64x1xf32>
    %68 = arith.mulf %65, %65 : vector<64x128xf32>
    %cst_6 = arith.constant dense<0.000000e+00> : vector<64xf32>
    %69 = vector.multi_reduction <add>, %68, %cst_6 [1] : vector<64x128xf32> to vector<64xf32>
    %70 = vector.shape_cast %69 : vector<64xf32> to vector<64x1xf32>
    %cst_7 = arith.constant 3.125000e-02 : f32
    %71 = vector.broadcast %cst_7 : f32 to vector<64x1xf32>
    %72 = arith.mulf %67, %71 : vector<64x1xf32>
    %cst_8 = arith.constant 3.125000e-02 : f32
    %73 = vector.broadcast %cst_8 : f32 to vector<64x1xf32>
    %74 = arith.mulf %70, %73 : vector<64x1xf32>
    %75 = arith.mulf %72, %72 : vector<64x1xf32>
    %76 = arith.subf %74, %75 : vector<64x1xf32>
    %77 = vector.broadcast %72 : vector<64x1xf32> to vector<64x128xf32>
    %78 = arith.subf %65, %77 : vector<64x128xf32>
    %cst_9 = arith.constant 9.99999974E-6 : f32
    %79 = vector.broadcast %cst_9 : f32 to vector<64x1xf32>
    %80 = arith.addf %76, %79 : vector<64x1xf32>
    %81 = math.rsqrt %80 : vector<64x1xf32>
    %82 = vector.broadcast %81 : vector<64x1xf32> to vector<64x128xf32>
    %83 = arith.mulf %78, %82 : vector<64x128xf32>
    %84 = arith.truncf %83 : vector<64x128xf32> to vector<64x128xbf16>
    %c0_10 = arith.constant 0 : index
    %c0_11 = arith.constant 0 : index
    %c0_12 = arith.constant 0 : index
    %85 = vector.load %arg4[%c0_10, %c0_11, %c0_12] : memref<2x128x128xbf16, #tpu.memory_space<vmem>>, vector<1x128x128xbf16>
    %86 = vector.shape_cast %85 : vector<1x128x128xbf16> to vector<128x128xbf16>
    %cst_13 = arith.constant dense<0.000000e+00> : vector<64x128xf32>
    %87 = tpu.matmul %84, %86, %cst_13 {dimension_numbers = #tpu.dot_dimension_numbers<[1], [0], [0], [1], [0, 0, 1, 1], [], []>} : vector<64x128xbf16>, vector<128x128xbf16>, vector<64x128xf32> -> vector<64x128xf32>
    %c0_14 = arith.constant 0 : index
    %c0_15 = arith.constant 0 : index
    %88 = vector.load %arg5[%c0_14, %c0_15] : memref<2x128xf32, #tpu.memory_space<vmem>>, vector<1x128xf32>
    %89 = vector.broadcast %88 : vector<1x128xf32> to vector<64x128xf32>
    %90 = arith.addf %87, %89 : vector<64x128xf32>
    %cst_16 = arith.constant 0.000000e+00 : f32
    %91 = vector.broadcast %cst_16 : f32 to vector<64x128xf32>
    %92 = arith.maximumf %90, %91 : vector<64x128xf32>
    %93 = arith.truncf %92 : vector<64x128xf32> to vector<64x128xbf16>
    %c0_17 = arith.constant 0 : index
    %c0_18 = arith.constant 0 : index
    %c0_19 = arith.constant 0 : index
    %94 = vector.load %arg6[%c0_17, %c0_18, %c0_19] : memref<2x128x128xbf16, #tpu.memory_space<vmem>>, vector<1x128x128xbf16>
    %95 = vector.shape_cast %94 : vector<1x128x128xbf16> to vector<128x128xbf16>
    %cst_20 = arith.constant dense<0.000000e+00> : vector<64x128xf32>
    %96 = tpu.matmul %93, %95, %cst_20 {dimension_numbers = #tpu.dot_dimension_numbers<[1], [0], [0], [1], [0, 0, 1, 1], [], []>} : vector<64x128xbf16>, vector<128x128xbf16>, vector<64x128xf32> -> vector<64x128xf32>
    %c0_21 = arith.constant 0 : index
    %c0_22 = arith.constant 0 : index
    %97 = vector.load %arg7[%c0_21, %c0_22] : memref<2x128xf32, #tpu.memory_space<vmem>>, vector<1x128xf32>
    %98 = vector.broadcast %97 : vector<1x128xf32> to vector<64x128xf32>
    %99 = arith.addf %96, %98 : vector<64x128xf32>
    %cst_23 = arith.constant 0.000000e+00 : f32
    %100 = vector.broadcast %cst_23 : f32 to vector<64x128xf32>
    %101 = arith.maximumf %99, %100 : vector<64x128xf32>
    %102 = arith.addf %65, %101 : vector<64x128xf32>
    %cst_24 = arith.constant dense<0.000000e+00> : vector<64xf32>
    %103 = vector.multi_reduction <add>, %102, %cst_24 [1] : vector<64x128xf32> to vector<64xf32>
    %104 = vector.shape_cast %103 : vector<64xf32> to vector<64x1xf32>
    %105 = arith.mulf %102, %102 : vector<64x128xf32>
    %cst_25 = arith.constant dense<0.000000e+00> : vector<64xf32>
    %106 = vector.multi_reduction <add>, %105, %cst_25 [1] : vector<64x128xf32> to vector<64xf32>
    %107 = vector.shape_cast %106 : vector<64xf32> to vector<64x1xf32>
    %cst_26 = arith.constant 3.125000e-02 : f32
    %108 = vector.broadcast %cst_26 : f32 to vector<64x1xf32>
    %109 = arith.mulf %104, %108 : vector<64x1xf32>
    %cst_27 = arith.constant 3.125000e-02 : f32
    %110 = vector.broadcast %cst_27 : f32 to vector<64x1xf32>
    %111 = arith.mulf %107, %110 : vector<64x1xf32>
    %112 = arith.mulf %109, %109 : vector<64x1xf32>
    %113 = arith.subf %111, %112 : vector<64x1xf32>
    %114 = vector.broadcast %109 : vector<64x1xf32> to vector<64x128xf32>
    %115 = arith.subf %102, %114 : vector<64x128xf32>
    %cst_28 = arith.constant 9.99999974E-6 : f32
    %116 = vector.broadcast %cst_28 : f32 to vector<64x1xf32>
    %117 = arith.addf %113, %116 : vector<64x1xf32>
    %118 = math.rsqrt %117 : vector<64x1xf32>
    %119 = vector.broadcast %118 : vector<64x1xf32> to vector<64x128xf32>
    %120 = arith.mulf %115, %119 : vector<64x128xf32>
    %121 = arith.truncf %120 : vector<64x128xf32> to vector<64x128xbf16>
    %c1 = arith.constant 1 : index
    %c0_29 = arith.constant 0 : index
    %c0_30 = arith.constant 0 : index
    %122 = vector.load %arg4[%c1, %c0_29, %c0_30] : memref<2x128x128xbf16, #tpu.memory_space<vmem>>, vector<1x128x128xbf16>
    %123 = vector.shape_cast %122 : vector<1x128x128xbf16> to vector<128x128xbf16>
    %cst_31 = arith.constant dense<0.000000e+00> : vector<64x128xf32>
    %124 = tpu.matmul %121, %123, %cst_31 {dimension_numbers = #tpu.dot_dimension_numbers<[1], [0], [0], [1], [0, 0, 1, 1], [], []>} : vector<64x128xbf16>, vector<128x128xbf16>, vector<64x128xf32> -> vector<64x128xf32>
    %c1_32 = arith.constant 1 : index
    %c0_33 = arith.constant 0 : index
    %125 = vector.load %arg5[%c1_32, %c0_33] : memref<2x128xf32, #tpu.memory_space<vmem>>, vector<1x128xf32>
    %126 = vector.broadcast %125 : vector<1x128xf32> to vector<64x128xf32>
    %127 = arith.addf %124, %126 : vector<64x128xf32>
    %cst_34 = arith.constant 0.000000e+00 : f32
    %128 = vector.broadcast %cst_34 : f32 to vector<64x128xf32>
    %129 = arith.maximumf %127, %128 : vector<64x128xf32>
    %130 = arith.truncf %129 : vector<64x128xf32> to vector<64x128xbf16>
    %c1_35 = arith.constant 1 : index
    %c0_36 = arith.constant 0 : index
    %c0_37 = arith.constant 0 : index
    %131 = vector.load %arg6[%c1_35, %c0_36, %c0_37] : memref<2x128x128xbf16, #tpu.memory_space<vmem>>, vector<1x128x128xbf16>
    %132 = vector.shape_cast %131 : vector<1x128x128xbf16> to vector<128x128xbf16>
    %cst_38 = arith.constant dense<0.000000e+00> : vector<64x128xf32>
    %133 = tpu.matmul %130, %132, %cst_38 {dimension_numbers = #tpu.dot_dimension_numbers<[1], [0], [0], [1], [0, 0, 1, 1], [], []>} : vector<64x128xbf16>, vector<128x128xbf16>, vector<64x128xf32> -> vector<64x128xf32>
    %c1_39 = arith.constant 1 : index
    %c0_40 = arith.constant 0 : index
    %134 = vector.load %arg7[%c1_39, %c0_40] : memref<2x128xf32, #tpu.memory_space<vmem>>, vector<1x128xf32>
    %135 = vector.broadcast %134 : vector<1x128xf32> to vector<64x128xf32>
    %136 = arith.addf %133, %135 : vector<64x128xf32>
    %cst_41 = arith.constant 0.000000e+00 : f32
    %137 = vector.broadcast %cst_41 : f32 to vector<64x128xf32>
    %138 = arith.maximumf %136, %137 : vector<64x128xf32>
    %139 = arith.addf %102, %138 : vector<64x128xf32>
    %140 = arith.truncf %139 : vector<64x128xf32> to vector<64x128xbf16>
    %c0_42 = arith.constant 0 : index
    %c0_43 = arith.constant 0 : index
    %141 = vector.load %arg8[%c0_42, %c0_43] : memref<128x8xbf16, #tpu.memory_space<vmem>>, vector<128x8xbf16>
    %cst_44 = arith.constant dense<0.000000e+00> : vector<64x8xf32>
    %142 = tpu.matmul %140, %141, %cst_44 {dimension_numbers = #tpu.dot_dimension_numbers<[1], [0], [0], [1], [0, 0, 1, 1], [], []>} : vector<64x128xbf16>, vector<128x8xbf16>, vector<64x8xf32> -> vector<64x8xf32>
    %c0_45 = arith.constant 0 : index
    %c0_46 = arith.constant 0 : index
    %143 = vector.load %arg9[%c0_45, %c0_46] : memref<1x8xf32, #tpu.memory_space<vmem>>, vector<1x8xf32>
    %144 = vector.broadcast %143 : vector<1x8xf32> to vector<64x8xf32>
    %145 = arith.addf %142, %144 : vector<64x8xf32>
    %c0_47 = arith.constant 0 : index
    %c0_48 = arith.constant 0 : index
    %146 = vector.load %arg10[%c0_47, %c0_48] : memref<64x8xf32, #tpu.memory_space<vmem>>, vector<64x8xf32>
    tpu.vector_store %arg10[%c0_47, %c0_48], %145 {strides = array<i32>} : memref<64x8xf32, #tpu.memory_space<vmem>>, vector<64x8xf32>,
    return
  }
  func.func @transform_0(%arg0: i32) -> (i32, i32) {
    %c0_i32 = arith.constant 0 : i32
    %c0_i32_0 = arith.constant 0 : i32
    return %arg0, %c0_i32 : i32, i32
  }
  func.func @transform_1(%arg0: i32) -> (i32, i32) {
    %c0_i32 = arith.constant 0 : i32
    %c0_i32_0 = arith.constant 0 : i32
    %c0_i32_1 = arith.constant 0 : i32
    return %c0_i32, %c0_i32_0 : i32, i32
  }
  func.func @transform_2(%arg0: i32) -> (i32, i32) {
    %c0_i32 = arith.constant 0 : i32
    %c0_i32_0 = arith.constant 0 : i32
    %c0_i32_1 = arith.constant 0 : i32
    return %c0_i32, %c0_i32_0 : i32, i32
  }
  func.func @transform_3(%arg0: i32) -> (i32, i32, i32) {
    %c0_i32 = arith.constant 0 : i32
    %c0_i32_0 = arith.constant 0 : i32
    %c0_i32_1 = arith.constant 0 : i32
    %c0_i32_2 = arith.constant 0 : i32
    return %c0_i32, %c0_i32_0, %c0_i32_1 : i32, i32, i32
  }
  func.func @transform_4(%arg0: i32) -> (i32, i32) {
    %c0_i32 = arith.constant 0 : i32
    %c0_i32_0 = arith.constant 0 : i32
    %c0_i32_1 = arith.constant 0 : i32
    return %c0_i32, %c0_i32_0 : i32, i32
  }
  func.func @transform_5(%arg0: i32) -> (i32, i32, i32) {
    %c0_i32 = arith.constant 0 : i32
    %c0_i32_0 = arith.constant 0 : i32
    %c0_i32_1 = arith.constant 0 : i32
    %c0_i32_2 = arith.constant 0 : i32
    return %c0_i32, %c0_i32_0, %c0_i32_1 : i32, i32, i32
  }
  func.func @transform_6(%arg0: i32) -> (i32, i32) {
    %c0_i32 = arith.constant 0 : i32
    %c0_i32_0 = arith.constant 0 : i32
    %c0_i32_1 = arith.constant 0 : i32
    return %c0_i32, %c0_i32_0 : i32, i32
  }
  func.func @transform_7(%arg0: i32) -> (i32, i32) {
    %c0_i32 = arith.constant 0 : i32
    %c0_i32_0 = arith.constant 0 : i32
    %c0_i32_1 = arith.constant 0 : i32
    return %c0_i32, %c0_i32_0 : i32, i32
  }
  func.func @transform_8(%arg0: i32) -> (i32, i32) {
    %c0_i32 = arith.constant 0 : i32
    %c0_i32_0 = arith.constant 0 : i32
    %c0_i32_1 = arith.constant 0 : i32
    return %c0_i32, %c0_i32_0 : i32, i32
  }
  func.func @transform_9(%arg0: i32) -> (i32, i32) {
    %c0_i32 = arith.constant 0 : i32
    %c0_i32_0 = arith.constant 0 : i32
    return %arg0, %c0_i32 : i32, i32
  }
}

</mosaic_0001>

<llo_original>
// kernel: tpu_custom_call.1
$region0: #{tpu_custom_call.1}
  #allocation0 [shape = 'u32[]', space=smem, size = 0x4, offset = 0x4, fixed_abs, tag = 'smem constant byte address 0x4 - core index']
  #allocation1 [shape = 'u32[144,128]{1,0:T(1,128)}', space=vmem, size = 0x12000, scoped, tag = 'internal scratch']
  %s0 = inlined_call_operand.vmem [shape: f32[64,7], index: 0, kind: input, shape index: {}]
  %s1 = inlined_call_operand.vmem [shape: bf16[19,128], index: 1, kind: input, shape index: {}]
  %s2 = inlined_call_operand.vmem [shape: f32[1,128], index: 2, kind: input, shape index: {}]
  %s3 = inlined_call_operand.vmem [shape: bf16[2,128,128], index: 3, kind: input, shape index: {}]
  %s4 = inlined_call_operand.vmem [shape: f32[2,128], index: 4, kind: input, shape index: {}]
  %s5 = inlined_call_operand.hbm [shape: bf16[2,128,128], index: 5, kind: input, shape index: {}]
  %s6 = inlined_call_operand.vmem [shape: f32[2,128], index: 6, kind: input, shape index: {}]
  %s7 = inlined_call_operand.vmem [shape: bf16[128,8], index: 7, kind: input, shape index: {}]
  %s8 = inlined_call_operand.vmem [shape: f32[1,8], index: 8, kind: input, shape index: {}]
  %s9 = inlined_call_operand.vmem [shape: f32[64,8], index: 9, kind: output, shape index: {}]
  %s10 = sld [smem:[#allocation0]]
  $region50: #{tpu_custom_call.1} parent=0
    _
  %s12 = ssub.s32 1, %s10
  %s13 = scalar_select 0, %s12, %s10
  $region1: #{tpu_custom_call.1} parent=0
    #allocation2 [shape = 'u8[65536]{0}', space=vmem, size = 0x10000, scoped, tag = 'input window, operand 5, single buffered']
    #allocation3 [shape = 's32[1]{0}', space=sflag, size = 0x4, scoped, tag = 'scoped memory for tpu_custom_call.1']
    %14 = vsyncpa [#allocation3], 0
    // Predicated region
    $region2: #{tpu_custom_call.1} parent=1 // pred_check
      _
    $region3: #{tpu_custom_call.1} parent=1 // pred_check_branch
      %16 = sbr.rel (0) target = $region5
    $region4: #{tpu_custom_call.1} parent=1 // pred_region
      _
    $region5: #{tpu_custom_call.1} parent=1 // pred_fallthru
      _
    // Predicated region
    $region6: #{tpu_custom_call.1} parent=1 // pred_check
      _
    $region7: #{tpu_custom_call.1} parent=1 // pred_check_branch
      %18 = sbr.rel (0) target = $region9
    $region8: #{tpu_custom_call.1} parent=1 // pred_region
      _
    $region9: #{tpu_custom_call.1} parent=1 // pred_fallthru
      _
    // Predicated region
    $region10: #{tpu_custom_call.1} parent=1 // pred_check
      _
    $region11: #{tpu_custom_call.1} parent=1 // pred_check_branch
      %20 = sbr.rel (0) target = $region13
    $region12: #{tpu_custom_call.1} parent=1 // pred_region
      _
    $region13: #{tpu_custom_call.1} parent=1 // pred_fallthru
      _
    // Predicated region
    $region14: #{tpu_custom_call.1} parent=1 // pred_check
      _
    $region15: #{tpu_custom_call.1} parent=1 // pred_check_branch
      %22 = sbr.rel (0) target = $region17
    $region16: #{tpu_custom_call.1} parent=1 // pred_region
      _
    $region17: #{tpu_custom_call.1} parent=1 // pred_fallthru
      _
    // Predicated region
    $region18: #{tpu_custom_call.1} parent=1 // pred_check
      _
    $region19: #{tpu_custom_call.1} parent=1 // pred_check_branch
      %24 = sbr.rel (0) target = $region21
    $region20: #{tpu_custom_call.1} parent=1 // pred_region
      _
    $region21: #{tpu_custom_call.1} parent=1 // pred_fallthru
      _
    // Predicated region
    $region22: #{tpu_custom_call.1} parent=1 // pred_check
      _
    $region23: #{tpu_custom_call.1} parent=1 // pred_check_branch
      %26 = sbr.rel (0) target = $region25
    $region24: #{tpu_custom_call.1} parent=1 // pred_region
      %s28 = ssub.s32 2048, 2048
      %29 = vsyncadd [#allocation3], %s28
      %s30 = sshll.u32 [#allocation2], 4
      %s31 = int_to_ptr.vmem [resolvable:$true] %s30
      %36 = dma.hbm_to_vmem [thread:$0]  %s5, 2048, %s31, [#allocation3], 64, 64, 4
    $region25: #{tpu_custom_call.1} parent=1 // pred_fallthru
      _
    // Predicated region
    $region26: #{tpu_custom_call.1} parent=1 // pred_check
      _
    $region27: #{tpu_custom_call.1} parent=1 // pred_check_branch
      %38 = sbr.rel (0) target = $region29
    $region28: #{tpu_custom_call.1} parent=1 // pred_region
      _
    $region29: #{tpu_custom_call.1} parent=1 // pred_fallthru
      _
    // Predicated region
    $region30: #{tpu_custom_call.1} parent=1 // pred_check
      _
    $region31: #{tpu_custom_call.1} parent=1 // pred_check_branch
      %40 = sbr.rel (0) target = $region33
    $region32: #{tpu_custom_call.1} parent=1 // pred_region
      _
    $region33: #{tpu_custom_call.1} parent=1 // pred_fallthru
      _
    // Predicated region
    $region34: #{tpu_custom_call.1} parent=1 // pred_check
      _
    $region35: #{tpu_custom_call.1} parent=1 // pred_check_branch
      %42 = sbr.rel (0) target = $region37
    $region36: #{tpu_custom_call.1} parent=1 // pred_region
      _
    $region37: #{tpu_custom_call.1} parent=1 // pred_fallthru
      _
    // Predicated region
    $region38: #{tpu_custom_call.1} parent=1 // pred_check
      _
    $region39: #{tpu_custom_call.1} parent=1 // pred_check_branch
      %44 = sbr.rel (0) target = $region41
    $region40: #{tpu_custom_call.1} parent=1 // pred_region
      %45 = dma.done [#allocation3], 2048
    $region41: #{tpu_custom_call.1} parent=1 // pred_fallthru
      _
    %v47 = vld [vmem:[%s0] sm:$0xff]
    %v48 = vld [vmem:[%s0 + $0x8] sm:$0xff]
    %v49 = vld [vmem:[%s0 + $0x10] sm:$0xff]
    %v50 = vld [vmem:[%s0 + $0x18] sm:$0xff]
    %v51 = vld [vmem:[%s0 + $0x20] sm:$0xff]
    %v52 = vld [vmem:[%s0 + $0x28] sm:$0xff]
    %v53 = vld [vmem:[%s0 + $0x30] sm:$0xff]
    %v54 = vld [vmem:[%s0 + $0x38] sm:$0xff]
    %v63 = vlaneseq
    %v64 = vand.u32 %v63, 127
    %65 = vset.pattern.permute.xlu0 0
    %66 = vperm.xlu0 %65, %v47
    %v67 = vpop.permute.xlu0 %66
    %68 = vset.pattern.permute.xlu0 0
    %69 = vperm.xlu0 %68, %v48
    %v70 = vpop.permute.xlu0 %69
    %71 = vset.pattern.permute.xlu0 0
    %72 = vperm.xlu0 %71, %v49
    %v73 = vpop.permute.xlu0 %72
    %74 = vset.pattern.permute.xlu0 0
    %75 = vperm.xlu0 %74, %v50
    %v76 = vpop.permute.xlu0 %75
    %77 = vset.pattern.permute.xlu0 0
    %78 = vperm.xlu0 %77, %v51
    %v79 = vpop.permute.xlu0 %78
    %80 = vset.pattern.permute.xlu0 0
    %81 = vperm.xlu0 %80, %v52
    %v82 = vpop.permute.xlu0 %81
    %83 = vset.pattern.permute.xlu0 0
    %84 = vperm.xlu0 %83, %v53
    %v85 = vpop.permute.xlu0 %84
    %86 = vset.pattern.permute.xlu0 0
    %87 = vperm.xlu0 %86, %v54
    %v88 = vpop.permute.xlu0 %87
    %vm89 = vcmp.eq.s32.totalorder %v64, %v67
    %vm90 = vcmp.eq.s32.totalorder %v64, %v70
    %vm91 = vcmp.eq.s32.totalorder %v64, %v73
    %vm92 = vcmp.eq.s32.totalorder %v64, %v76
    %vm93 = vcmp.eq.s32.totalorder %v64, %v79
    %vm94 = vcmp.eq.s32.totalorder %v64, %v82
    %vm95 = vcmp.eq.s32.totalorder %v64, %v85
    %vm96 = vcmp.eq.s32.totalorder %v64, %v88
    %v97 = vsel %vm89, 1, 0
    %v98 = vsel %vm90, 1, 0
    %v99 = vsel %vm91, 1, 0
    %v100 = vsel %vm92, 1, 0
    %v101 = vsel %vm93, 1, 0
    %v102 = vsel %vm94, 1, 0
    %v103 = vsel %vm95, 1, 0
    %v104 = vsel %vm96, 1, 0
    %v105 = vcvt.s32.f32 %v97
    %v106 = vcvt.s32.f32 %v98
    %v107 = vcvt.s32.f32 %v99
    %v108 = vcvt.s32.f32 %v100
    %v109 = vcvt.s32.f32 %v101
    %v110 = vcvt.s32.f32 %v102
    %v111 = vcvt.s32.f32 %v103
    %v112 = vcvt.s32.f32 %v104
    %v113 = vpack.c.bf16 %v106, %v105
    %v114 = vpack.c.bf16 %v108, %v107
    %v115 = vpack.c.bf16 %v110, %v109
    %v116 = vpack.c.bf16 %v112, %v111
    %117 = vset.pattern.permute.xlu0 1
    %118 = vperm.xlu0 %117, %v47
    %v119 = vpop.permute.xlu0 %118
    %120 = vset.pattern.permute.xlu0 1
    %121 = vperm.xlu0 %120, %v48
    %v122 = vpop.permute.xlu0 %121
    %123 = vset.pattern.permute.xlu0 1
    %124 = vperm.xlu0 %123, %v49
    %v125 = vpop.permute.xlu0 %124
    %126 = vset.pattern.permute.xlu0 1
    %127 = vperm.xlu0 %126, %v50
    %v128 = vpop.permute.xlu0 %127
    %129 = vset.pattern.permute.xlu0 1
    %130 = vperm.xlu0 %129, %v51
    %v131 = vpop.permute.xlu0 %130
    %132 = vset.pattern.permute.xlu0 1
    %133 = vperm.xlu0 %132, %v52
    %v134 = vpop.permute.xlu0 %133
    %135 = vset.pattern.permute.xlu0 1
    %136 = vperm.xlu0 %135, %v53
    %v137 = vpop.permute.xlu0 %136
    %138 = vset.pattern.permute.xlu0 1
    %139 = vperm.xlu0 %138, %v54
    %v140 = vpop.permute.xlu0 %139
    %vm141 = vcmp.eq.s32.totalorder %v64, %v119
    %vm142 = vcmp.eq.s32.totalorder %v64, %v122
    %vm143 = vcmp.eq.s32.totalorder %v64, %v125
    %vm144 = vcmp.eq.s32.totalorder %v64, %v128
    %vm145 = vcmp.eq.s32.totalorder %v64, %v131
    %vm146 = vcmp.eq.s32.totalorder %v64, %v134
    %vm147 = vcmp.eq.s32.totalorder %v64, %v137
    %vm148 = vcmp.eq.s32.totalorder %v64, %v140
    %v149 = vsel %vm141, 1, 0
    %v150 = vsel %vm142, 1, 0
    %v151 = vsel %vm143, 1, 0
    %v152 = vsel %vm144, 1, 0
    %v153 = vsel %vm145, 1, 0
    %v154 = vsel %vm146, 1, 0
    %v155 = vsel %vm147, 1, 0
    %v156 = vsel %vm148, 1, 0
    %v157 = vcvt.s32.f32 %v149
    %v158 = vcvt.s32.f32 %v150
    %v159 = vcvt.s32.f32 %v151
    %v160 = vcvt.s32.f32 %v152
    %v161 = vcvt.s32.f32 %v153
    %v162 = vcvt.s32.f32 %v154
    %v163 = vcvt.s32.f32 %v155
    %v164 = vcvt.s32.f32 %v156
    %v165 = vpack.c.bf16 %v158, %v157
    %v166 = vpack.c.bf16 %v160, %v159
    %v167 = vpack.c.bf16 %v162, %v161
    %v168 = vpack.c.bf16 %v164, %v163
    %v169 = vadd.bf16 %v113, %v165
    %v170 = vadd.bf16 %v114, %v166
    %v171 = vadd.bf16 %v115, %v167
    %v172 = vadd.bf16 %v116, %v168
    %173 = vset.pattern.permute.xlu0 2
    %174 = vperm.xlu0 %173, %v47
    %v175 = vpop.permute.xlu0 %174
    %176 = vset.pattern.permute.xlu0 2
    %177 = vperm.xlu0 %176, %v48
    %v178 = vpop.permute.xlu0 %177
    %179 = vset.pattern.permute.xlu0 2
    %180 = vperm.xlu0 %179, %v49
    %v181 = vpop.permute.xlu0 %180
    %182 = vset.pattern.permute.xlu0 2
    %183 = vperm.xlu0 %182, %v50
    %v184 = vpop.permute.xlu0 %183
    %185 = vset.pattern.permute.xlu0 2
    %186 = vperm.xlu0 %185, %v51
    %v187 = vpop.permute.xlu0 %186
    %188 = vset.pattern.permute.xlu0 2
    %189 = vperm.xlu0 %188, %v52
    %v190 = vpop.permute.xlu0 %189
    %191 = vset.pattern.permute.xlu0 2
    %192 = vperm.xlu0 %191, %v53
    %v193 = vpop.permute.xlu0 %192
    %194 = vset.pattern.permute.xlu0 2
    %195 = vperm.xlu0 %194, %v54
    %v196 = vpop.permute.xlu0 %195
    %vm197 = vcmp.eq.s32.totalorder %v64, %v175
    %vm198 = vcmp.eq.s32.totalorder %v64, %v178
    %vm199 = vcmp.eq.s32.totalorder %v64, %v181
    %vm200 = vcmp.eq.s32.totalorder %v64, %v184
    %vm201 = vcmp.eq.s32.totalorder %v64, %v187
    %vm202 = vcmp.eq.s32.totalorder %v64, %v190
    %vm203 = vcmp.eq.s32.totalorder %v64, %v193
    %vm204 = vcmp.eq.s32.totalorder %v64, %v196
    %v205 = vsel %vm197, 1, 0
    %v206 = vsel %vm198, 1, 0
    %v207 = vsel %vm199, 1, 0
    %v208 = vsel %vm200, 1, 0
    %v209 = vsel %vm201, 1, 0
    %v210 = vsel %vm202, 1, 0
    %v211 = vsel %vm203, 1, 0
    %v212 = vsel %vm204, 1, 0
    %v213 = vcvt.s32.f32 %v205
    %v214 = vcvt.s32.f32 %v206
    %v215 = vcvt.s32.f32 %v207
    %v216 = vcvt.s32.f32 %v208
    %v217 = vcvt.s32.f32 %v209
    %v218 = vcvt.s32.f32 %v210
    %v219 = vcvt.s32.f32 %v211
    %v220 = vcvt.s32.f32 %v212
    %v221 = vpack.c.bf16 %v214, %v213
    %v222 = vpack.c.bf16 %v216, %v215
    %v223 = vpack.c.bf16 %v218, %v217
    %v224 = vpack.c.bf16 %v220, %v219
    %v225 = vadd.bf16 %v169, %v221
    %v226 = vadd.bf16 %v170, %v222
    %v227 = vadd.bf16 %v171, %v223
    %v228 = vadd.bf16 %v172, %v224
    %vm229 = vcmp.eq.s32.totalorder %v64, 15
    %v230 = vsel %vm229, 1, 0
    %v231 = vcvt.s32.f32 %v230
    %232 = vset.pattern.permute.xlu0 3
    %233 = vperm.xlu0 %232, %v47
    %v234 = vpop.permute.xlu0 %233
    %236 = vset.pattern.permute.xlu0 3
    %237 = vperm.xlu0 %236, %v48
    %v238 = vpop.permute.xlu0 %237
    %240 = vset.pattern.permute.xlu0 3
    %241 = vperm.xlu0 %240, %v49
    %v242 = vpop.permute.xlu0 %241
    %244 = vset.pattern.permute.xlu0 3
    %245 = vperm.xlu0 %244, %v50
    %v246 = vpop.permute.xlu0 %245
    %248 = vset.pattern.permute.xlu0 3
    %249 = vperm.xlu0 %248, %v51
    %v250 = vpop.permute.xlu0 %249
    %252 = vset.pattern.permute.xlu0 3
    %253 = vperm.xlu0 %252, %v52
    %v254 = vpop.permute.xlu0 %253
    %256 = vset.pattern.permute.xlu0 3
    %257 = vperm.xlu0 %256, %v53
    %v258 = vpop.permute.xlu0 %257
    %260 = vset.pattern.permute.xlu0 3
    %261 = vperm.xlu0 %260, %v54
    %v262 = vpop.permute.xlu0 %261
    %v264 = vmul.f32 %v231, %v234
    %v265 = vmul.f32 %v231, %v238
    %v266 = vmul.f32 %v231, %v242
    %v267 = vmul.f32 %v231, %v246
    %v268 = vmul.f32 %v231, %v250
    %v269 = vmul.f32 %v231, %v254
    %v270 = vmul.f32 %v231, %v258
    %v271 = vmul.f32 %v231, %v262
    %v272 = vpack.c.bf16 %v265, %v264
    %v273 = vpack.c.bf16 %v267, %v266
    %v274 = vpack.c.bf16 %v269, %v268
    %v275 = vpack.c.bf16 %v271, %v270
    %v276 = vadd.bf16 %v225, %v272
    %v277 = vadd.bf16 %v226, %v273
    %v278 = vadd.bf16 %v227, %v274
    %v279 = vadd.bf16 %v228, %v275
    %vm280 = vcmp.eq.s32.totalorder %v64, 16
    %v281 = vsel %vm280, 1, 0
    %v282 = vcvt.s32.f32 %v281
    %283 = vset.pattern.permute.xlu0 4
    %284 = vperm.xlu0 %283, %v47
    %v285 = vpop.permute.xlu0 %284
    %287 = vset.pattern.permute.xlu0 4
    %288 = vperm.xlu0 %287, %v48
    %v289 = vpop.permute.xlu0 %288
    %291 = vset.pattern.permute.xlu0 4
    %292 = vperm.xlu0 %291, %v49
    %v293 = vpop.permute.xlu0 %292
    %295 = vset.pattern.permute.xlu0 4
    %296 = vperm.xlu0 %295, %v50
    %v297 = vpop.permute.xlu0 %296
    %299 = vset.pattern.permute.xlu0 4
    %300 = vperm.xlu0 %299, %v51
    %v301 = vpop.permute.xlu0 %300
    %303 = vset.pattern.permute.xlu0 4
    %304 = vperm.xlu0 %303, %v52
    %v305 = vpop.permute.xlu0 %304
    %307 = vset.pattern.permute.xlu0 4
    %308 = vperm.xlu0 %307, %v53
    %v309 = vpop.permute.xlu0 %308
    %311 = vset.pattern.permute.xlu0 4
    %312 = vperm.xlu0 %311, %v54
    %v313 = vpop.permute.xlu0 %312
    %v315 = vmul.f32 %v282, %v285
    %v316 = vmul.f32 %v282, %v289
    %v317 = vmul.f32 %v282, %v293
    %v318 = vmul.f32 %v282, %v297
    %v319 = vmul.f32 %v282, %v301
    %v320 = vmul.f32 %v282, %v305
    %v321 = vmul.f32 %v282, %v309
    %v322 = vmul.f32 %v282, %v313
    %v323 = vpack.c.bf16 %v316, %v315
    %v324 = vpack.c.bf16 %v318, %v317
    %v325 = vpack.c.bf16 %v320, %v319
    %v326 = vpack.c.bf16 %v322, %v321
    %v327 = vadd.bf16 %v276, %v323
    %v328 = vadd.bf16 %v277, %v324
    %v329 = vadd.bf16 %v278, %v325
    %v330 = vadd.bf16 %v279, %v326
    %vm331 = vcmp.eq.s32.totalorder %v64, 17
    %v332 = vsel %vm331, 1, 0
    %v333 = vcvt.s32.f32 %v332
    %334 = vset.pattern.permute.xlu0 5
    %335 = vperm.xlu0 %334, %v47
    %v336 = vpop.permute.xlu0 %335
    %338 = vset.pattern.permute.xlu0 5
    %339 = vperm.xlu0 %338, %v48
    %v340 = vpop.permute.xlu0 %339
    %342 = vset.pattern.permute.xlu0 5
    %343 = vperm.xlu0 %342, %v49
    %v344 = vpop.permute.xlu0 %343
    %346 = vset.pattern.permute.xlu0 5
    %347 = vperm.xlu0 %346, %v50
    %v348 = vpop.permute.xlu0 %347
    %350 = vset.pattern.permute.xlu0 5
    %351 = vperm.xlu0 %350, %v51
    %v352 = vpop.permute.xlu0 %351
    %354 = vset.pattern.permute.xlu0 5
    %355 = vperm.xlu0 %354, %v52
    %v356 = vpop.permute.xlu0 %355
    %358 = vset.pattern.permute.xlu0 5
    %359 = vperm.xlu0 %358, %v53
    %v360 = vpop.permute.xlu0 %359
    %362 = vset.pattern.permute.xlu0 5
    %363 = vperm.xlu0 %362, %v54
    %v364 = vpop.permute.xlu0 %363
    %v366 = vmul.f32 %v333, %v336
    %v367 = vmul.f32 %v333, %v340
    %v368 = vmul.f32 %v333, %v344
    %v369 = vmul.f32 %v333, %v348
    %v370 = vmul.f32 %v333, %v352
    %v371 = vmul.f32 %v333, %v356
    %v372 = vmul.f32 %v333, %v360
    %v373 = vmul.f32 %v333, %v364
    %v374 = vpack.c.bf16 %v367, %v366
    %v375 = vpack.c.bf16 %v369, %v368
    %v376 = vpack.c.bf16 %v371, %v370
    %v377 = vpack.c.bf16 %v373, %v372
    %v378 = vadd.bf16 %v327, %v374
    %v379 = vadd.bf16 %v328, %v375
    %v380 = vadd.bf16 %v329, %v376
    %v381 = vadd.bf16 %v330, %v377
    %vm382 = vcmp.eq.s32.totalorder %v64, 18
    %v383 = vsel %vm382, 1, 0
    %v384 = vcvt.s32.f32 %v383
    %385 = vset.pattern.permute.xlu0 6
    %386 = vperm.xlu0 %385, %v47
    %v387 = vpop.permute.xlu0 %386
    %389 = vset.pattern.permute.xlu0 6
    %390 = vperm.xlu0 %389, %v48
    %v391 = vpop.permute.xlu0 %390
    %393 = vset.pattern.permute.xlu0 6
    %394 = vperm.xlu0 %393, %v49
    %v395 = vpop.permute.xlu0 %394
    %397 = vset.pattern.permute.xlu0 6
    %398 = vperm.xlu0 %397, %v50
    %v399 = vpop.permute.xlu0 %398
    %401 = vset.pattern.permute.xlu0 6
    %402 = vperm.xlu0 %401, %v51
    %v403 = vpop.permute.xlu0 %402
    %405 = vset.pattern.permute.xlu0 6
    %406 = vperm.xlu0 %405, %v52
    %v407 = vpop.permute.xlu0 %406
    %409 = vset.pattern.permute.xlu0 6
    %410 = vperm.xlu0 %409, %v53
    %v411 = vpop.permute.xlu0 %410
    %413 = vset.pattern.permute.xlu0 6
    %414 = vperm.xlu0 %413, %v54
    %v415 = vpop.permute.xlu0 %414
    %v417 = vmul.f32 %v384, %v387
    %v418 = vmul.f32 %v384, %v391
    %v419 = vmul.f32 %v384, %v395
    %v420 = vmul.f32 %v384, %v399
    %v421 = vmul.f32 %v384, %v403
    %v422 = vmul.f32 %v384, %v407
    %v423 = vmul.f32 %v384, %v411
    %v424 = vmul.f32 %v384, %v415
    %v425 = vpack.c.bf16 %v418, %v417
    %v426 = vpack.c.bf16 %v420, %v419
    %v427 = vpack.c.bf16 %v422, %v421
    %v428 = vpack.c.bf16 %v424, %v423
    %v429 = vadd.bf16 %v378, %v425
    %v430 = vadd.bf16 %v379, %v426
    %v431 = vadd.bf16 %v380, %v427
    %v432 = vadd.bf16 %v381, %v428
    %v433 = vld [vmem:[%s1] sm:$0xf]
    %v434 = vld [vmem:[%s1 + $0x4] sm:$0xf]
    %v435 = vld [vmem:[%s1 + $0x8] sm:$0x3]
    %v436 = vld [vmem:[%s2] sm:$0x1]
    %v438 = vlaneseq
    %v439 = vshrl.u32 %v438, 7
    %v440 = vsub.s32 0, %v439
    %v441 = vrot.slane %v436, %v440
    %v446 = vunpack.c.l.b16 %v433
    %v447 = vunpack.c.l.b16 %v434
    %v448 = vunpack.c.l.b16 %v435
    %v449 = vpack.c.b16 %v447, %v446
    %v450 = vpack.c.b16 %v448, %v448
    %vm452 = vcmask 154624
    %v454 = vsel %vm452, %v429, 0
    %v457 = vsel %vm452, %v430, 0
    %v460 = vsel %vm452, %v431, 0
    %v463 = vsel %vm452, %v432, 0
    %vm465 = vcmask 1040384
    %vm466 = vcmask 1041408
    %v467 = vsel %vm465, 4294967295, 65535
    %v468 = vsel %vm466, %v467, 0
    %v470 = vand.u32 %v450, %v468
    %472 = vmatprep.subr.bf16.mxu0 0
    %473 = vmatpush1.bf16.msra.mxu0 %v449
    %474 = vmatprep.subr.bf16.mxu0 0
    %475 = vmatpush1.bf16.msra.mxu0 %v470
    %476 = vmatprep.subr.bf16.mxu0 0
    %477 = vmatpush1.bf16.msra.mxu0 0
    %478 = vmatprep.subr.bf16.mxu0 0
    %479 = vmatpush1.bf16.msra.mxu0 0
    %480 = vmatprep.subr.bf16.mxu0 0
    %481 = vmatpush1.bf16.msra.mxu0 0
    %482 = vmatprep.subr.bf16.mxu0 0
    %483 = vmatpush1.bf16.msra.mxu0 0
    %484 = vmatprep.subr.bf16.mxu0 0
    %485 = vmatpush1.bf16.msra.mxu0 0
    %486 = vmatprep.subr.bf16.mxu0 0
    %487 = vmatpush1.bf16.msra.mxu0 0
    %488 = vmatprep.subr.bf16.mxu0 0
    %489 = vmatpush1.bf16.msra.mxu0 0
    %490 = vmatprep.subr.bf16.mxu0 0
    %491 = vmatpush1.bf16.msra.mxu0 0
    %492 = vmatprep.subr.bf16.mxu0 0
    %493 = vmatpush1.bf16.msra.mxu0 0
    %494 = vmatprep.subr.bf16.mxu0 0
    %495 = vmatpush1.bf16.msra.mxu0 0
    %496 = vmatprep.subr.bf16.mxu0 0
    %497 = vmatpush1.bf16.msra.mxu0 0
    %498 = vmatprep.subr.bf16.mxu0 0
    %499 = vmatpush1.bf16.msra.mxu0 0
    %500 = vmatprep.subr.bf16.mxu0 0
    %501 = vmatpush1.bf16.msra.mxu0 0
    %502 = vmatprep.subr.bf16.mxu0 0
    %503 = vmatpush1.bf16.msra.mxu0 0
    %504 = vmatprep.mubr.bf16.mxu0 0
    %505 = vmatmul.mubr.bf16.gmra.mrb[0].mxu0 %v454
    %v506 = vpop.f32.mrb[0].mxu0
    %v507 = vadd.f32 %v441, %v506
    %v508 = vpop.f32.mrb[0].mxu0
    %v509 = vpop.f32.mrb[0].mxu0
    %v510 = vadd.f32 %v441, %v509
    %v511 = vpop.f32.mrb[0].mxu0
    %512 = vmatprep.mubr.bf16.mxu0 0
    %513 = vmatmul.mubr.bf16.gmra.mrb[0].mxu0 %v457
    %v514 = vpop.f32.mrb[0].mxu0
    %v515 = vadd.f32 %v441, %v514
    %v516 = vpop.f32.mrb[0].mxu0
    %v517 = vpop.f32.mrb[0].mxu0
    %v518 = vadd.f32 %v441, %v517
    %v519 = vpop.f32.mrb[0].mxu0
    %520 = vmatprep.mubr.bf16.mxu0 0
    %521 = vmatmul.mubr.bf16.gmra.mrb[0].mxu0 %v460
    %v522 = vpop.f32.mrb[0].mxu0
    %v523 = vadd.f32 %v441, %v522
    %v524 = vpop.f32.mrb[0].mxu0
    %v525 = vpop.f32.mrb[0].mxu0
    %v526 = vadd.f32 %v441, %v525
    %v527 = vpop.f32.mrb[0].mxu0
    %528 = vmatprep.mubr.bf16.mxu0 0
    %529 = vmatmul.mubr.bf16.gmra.mrb[0].mxu0 %v463
    %v530 = vpop.f32.mrb[0].mxu0
    %v531 = vadd.f32 %v441, %v530
    %v532 = vpop.f32.mrb[0].mxu0
    %v533 = vpop.f32.mrb[0].mxu0
    %v534 = vadd.f32 %v441, %v533
    %v535 = vpop.f32.mrb[0].mxu0
    %536 = vdwg.mxu0
    %537 = vadd.xlane.f32.xlu0 %v507
    %v538 = vpop.xlane.xlu0 %537
    %539 = vadd.xlane.f32.xlu0 %v510
    %v540 = vpop.xlane.xlu0 %539
    %541 = vadd.xlane.f32.xlu0 %v515
    %v542 = vpop.xlane.xlu0 %541
    %543 = vadd.xlane.f32.xlu0 %v518
    %v544 = vpop.xlane.xlu0 %543
    %545 = vadd.xlane.f32.xlu0 %v523
    %v546 = vpop.xlane.xlu0 %545
    %547 = vadd.xlane.f32.xlu0 %v526
    %v548 = vpop.xlane.xlu0 %547
    %549 = vadd.xlane.f32.xlu0 %v531
    %v550 = vpop.xlane.xlu0 %549
    %551 = vadd.xlane.f32.xlu0 %v534
    %v552 = vpop.xlane.xlu0 %551
    %v553 = vmul.f32 %v507, %v507
    %v554 = vmul.f32 %v510, %v510
    %v555 = vmul.f32 %v515, %v515
    %v556 = vmul.f32 %v518, %v518
    %v557 = vmul.f32 %v523, %v523
    %v558 = vmul.f32 %v526, %v526
    %v559 = vmul.f32 %v531, %v531
    %v560 = vmul.f32 %v534, %v534
    %561 = vadd.xlane.f32.xlu0 %v553
    %v562 = vpop.xlane.xlu0 %561
    %563 = vadd.xlane.f32.xlu0 %v554
    %v564 = vpop.xlane.xlu0 %563
    %565 = vadd.xlane.f32.xlu0 %v555
    %v566 = vpop.xlane.xlu0 %565
    %567 = vadd.xlane.f32.xlu0 %v556
    %v568 = vpop.xlane.xlu0 %567
    %569 = vadd.xlane.f32.xlu0 %v557
    %v570 = vpop.xlane.xlu0 %569
    %571 = vadd.xlane.f32.xlu0 %v558
    %v572 = vpop.xlane.xlu0 %571
    %573 = vadd.xlane.f32.xlu0 %v559
    %v574 = vpop.xlane.xlu0 %573
    %575 = vadd.xlane.f32.xlu0 %v560
    %v576 = vpop.xlane.xlu0 %575
    %v577 = vmul.f32 %v538, 0.03125
    %v578 = vmul.f32 %v540, 0.03125
    %v579 = vmul.f32 %v542, 0.03125
    %v580 = vmul.f32 %v544, 0.03125
    %v581 = vmul.f32 %v546, 0.03125
    %v582 = vmul.f32 %v548, 0.03125
    %v583 = vmul.f32 %v550, 0.03125
    %v584 = vmul.f32 %v552, 0.03125
    %v585 = vmul.f32 %v562, 0.03125
    %v586 = vmul.f32 %v564, 0.03125
    %v587 = vmul.f32 %v566, 0.03125
    %v588 = vmul.f32 %v568, 0.03125
    %v589 = vmul.f32 %v570, 0.03125
    %v590 = vmul.f32 %v572, 0.03125
    %v591 = vmul.f32 %v574, 0.03125
    %v592 = vmul.f32 %v576, 0.03125
    %v593 = vmul.f32 %v577, %v577
    %v594 = vmul.f32 %v578, %v578
    %v595 = vmul.f32 %v579, %v579
    %v596 = vmul.f32 %v580, %v580
    %v597 = vmul.f32 %v581, %v581
    %v598 = vmul.f32 %v582, %v582
    %v599 = vmul.f32 %v583, %v583
    %v600 = vmul.f32 %v584, %v584
    %v601 = vsub.f32 %v585, %v593
    %v602 = vsub.f32 %v586, %v594
    %v603 = vsub.f32 %v587, %v595
    %v604 = vsub.f32 %v588, %v596
    %v605 = vsub.f32 %v589, %v597
    %v606 = vsub.f32 %v590, %v598
    %v607 = vsub.f32 %v591, %v599
    %v608 = vsub.f32 %v592, %v600
    %v609 = vsub.f32 %v507, %v577
    %v610 = vsub.f32 %v510, %v578
    %v611 = vsub.f32 %v515, %v579
    %v612 = vsub.f32 %v518, %v580
    %v613 = vsub.f32 %v523, %v581
    %v614 = vsub.f32 %v526, %v582
    %v615 = vsub.f32 %v531, %v583
    %v616 = vsub.f32 %v534, %v584
    %v617 = vadd.f32 %v601, 1e-05
    %v618 = vadd.f32 %v602, 1e-05
    %v619 = vadd.f32 %v603, 1e-05
    %v620 = vadd.f32 %v604, 1e-05
    %v621 = vadd.f32 %v605, 1e-05
    %v622 = vadd.f32 %v606, 1e-05
    %v623 = vadd.f32 %v607, 1e-05
    %v624 = vadd.f32 %v608, 1e-05
    %v625 = vrsqrt.pop %v617
    %v626 = vrsqrt.pop %v618
    %v627 = vrsqrt.pop %v619
    %v628 = vrsqrt.pop %v620
    %v629 = vrsqrt.pop %v621
    %v630 = vrsqrt.pop %v622
    %v631 = vrsqrt.pop %v623
    %v632 = vrsqrt.pop %v624
    %v633 = vmul.f32 %v609, %v625
    %v634 = vmul.f32 %v610, %v626
    %v635 = vmul.f32 %v611, %v627
    %v636 = vmul.f32 %v612, %v628
    %v637 = vmul.f32 %v613, %v629
    %v638 = vmul.f32 %v614, %v630
    %v639 = vmul.f32 %v615, %v631
    %v640 = vmul.f32 %v616, %v632
    %v641 = vpack.c.bf16 %v634, %v633
    %v642 = vpack.c.bf16 %v636, %v635
    %v643 = vpack.c.bf16 %v638, %v637
    %v644 = vpack.c.bf16 %v640, %v639
    %v645 = vld [vmem:[%s3] sm:$0xf]
    %v646 = vld [vmem:[%s3 + $0x4] sm:$0xf]
    %v647 = vld [vmem:[%s3 + $0x8] sm:$0xf]
    %v648 = vld [vmem:[%s3 + $0xc] sm:$0xf]
    %v649 = vld [vmem:[%s3 + $0x10] sm:$0xf]
    %v650 = vld [vmem:[%s3 + $0x14] sm:$0xf]
    %v651 = vld [vmem:[%s3 + $0x18] sm:$0xf]
    %v652 = vld [vmem:[%s3 + $0x1c] sm:$0xf]
    %v653 = vld [vmem:[%s3 + $0x20] sm:$0xf]
    %v654 = vld [vmem:[%s3 + $0x24] sm:$0xf]
    %v655 = vld [vmem:[%s3 + $0x28] sm:$0xf]
    %v656 = vld [vmem:[%s3 + $0x2c] sm:$0xf]
    %v657 = vld [vmem:[%s3 + $0x30] sm:$0xf]
    %v658 = vld [vmem:[%s3 + $0x34] sm:$0xf]
    %v659 = vld [vmem:[%s3 + $0x38] sm:$0xf]
    %v660 = vld [vmem:[%s3 + $0x3c] sm:$0xf]
    %v661 = vld [vmem:[%s4] sm:$0x1]
    %v662 = vlaneseq
    %v663 = vshrl.u32 %v662, 7
    %v664 = vsub.s32 0, %v663
    %v665 = vrot.slane %v661, %v664
    %v682 = vunpack.c.l.b16 %v645
    %v683 = vunpack.c.l.b16 %v646
    %v684 = vunpack.c.l.b16 %v647
    %v685 = vunpack.c.l.b16 %v648
    %v686 = vunpack.c.l.b16 %v649
    %v687 = vunpack.c.l.b16 %v650
    %v688 = vunpack.c.l.b16 %v651
    %v689 = vunpack.c.l.b16 %v652
    %v690 = vunpack.c.l.b16 %v653
    %v691 = vunpack.c.l.b16 %v654
    %v692 = vunpack.c.l.b16 %v655
    %v693 = vunpack.c.l.b16 %v656
    %v694 = vunpack.c.l.b16 %v657
    %v695 = vunpack.c.l.b16 %v658
    %v696 = vunpack.c.l.b16 %v659
    %v697 = vunpack.c.l.b16 %v660
    %v698 = vpack.c.b16 %v683, %v682
    %v699 = vpack.c.b16 %v685, %v684
    %v700 = vpack.c.b16 %v687, %v686
    %v701 = vpack.c.b16 %v689, %v688
    %v702 = vpack.c.b16 %v691, %v690
    %v703 = vpack.c.b16 %v693, %v692
    %v704 = vpack.c.b16 %v695, %v694
    %v705 = vpack.c.b16 %v697, %v696
    %714 = vmatprep.subr.bf16.mxu0 0
    %715 = vmatpush1.bf16.msra.mxu0 %v698
    %716 = vmatprep.subr.bf16.mxu0 0
    %717 = vmatpush1.bf16.msra.mxu0 %v699
    %718 = vmatprep.subr.bf16.mxu0 0
    %719 = vmatpush1.bf16.msra.mxu0 %v700
    %720 = vmatprep.subr.bf16.mxu0 0
    %721 = vmatpush1.bf16.msra.mxu0 %v701
    %722 = vmatprep.subr.bf16.mxu0 0
    %723 = vmatpush1.bf16.msra.mxu0 %v702
    %724 = vmatprep.subr.bf16.mxu0 0
    %725 = vmatpush1.bf16.msra.mxu0 %v703
    %726 = vmatprep.subr.bf16.mxu0 0
    %727 = vmatpush1.bf16.msra.mxu0 %v704
    %728 = vmatprep.subr.bf16.mxu0 0
    %729 = vmatpush1.bf16.msra.mxu0 %v705
    %730 = vmatprep.subr.bf16.mxu0 0
    %731 = vmatpush1.bf16.msra.mxu0 0
    %732 = vmatprep.subr.bf16.mxu0 0
    %733 = vmatpush1.bf16.msra.mxu0 0
    %734 = vmatprep.subr.bf16.mxu0 0
    %735 = vmatpush1.bf16.msra.mxu0 0
    %736 = vmatprep.subr.bf16.mxu0 0
    %737 = vmatpush1.bf16.msra.mxu0 0
    %738 = vmatprep.subr.bf16.mxu0 0
    %739 = vmatpush1.bf16.msra.mxu0 0
    %740 = vmatprep.subr.bf16.mxu0 0
    %741 = vmatpush1.bf16.msra.mxu0 0
    %742 = vmatprep.subr.bf16.mxu0 0
    %743 = vmatpush1.bf16.msra.mxu0 0
    %744 = vmatprep.subr.bf16.mxu0 0
    %745 = vmatpush1.bf16.msra.mxu0 0
    %746 = vmatprep.mubr.bf16.mxu0 0
    %747 = vmatmul.mubr.bf16.gmra.mrb[0].mxu0 %v641
    %v748 = vpop.f32.mrb[0].mxu0
    %v749 = vadd.f32 %v665, %v748
    %v750 = vpop.f32.mrb[0].mxu0
    %v751 = vpop.f32.mrb[0].mxu0
    %v752 = vadd.f32 %v665, %v751
    %v753 = vpop.f32.mrb[0].mxu0
    %754 = vmatprep.mubr.bf16.mxu0 0
    %755 = vmatmul.mubr.bf16.gmra.mrb[0].mxu0 %v642
    %v756 = vpop.f32.mrb[0].mxu0
    %v757 = vadd.f32 %v665, %v756
    %v758 = vpop.f32.mrb[0].mxu0
    %v759 = vpop.f32.mrb[0].mxu0
    %v760 = vadd.f32 %v665, %v759
    %v761 = vpop.f32.mrb[0].mxu0
    %762 = vmatprep.mubr.bf16.mxu0 0
    %763 = vmatmul.mubr.bf16.gmra.mrb[0].mxu0 %v643
    %v764 = vpop.f32.mrb[0].mxu0
    %v765 = vadd.f32 %v665, %v764
    %v766 = vpop.f32.mrb[0].mxu0
    %v767 = vpop.f32.mrb[0].mxu0
    %v768 = vadd.f32 %v665, %v767
    %v769 = vpop.f32.mrb[0].mxu0
    %770 = vmatprep.mubr.bf16.mxu0 0
    %771 = vmatmul.mubr.bf16.gmra.mrb[0].mxu0 %v644
    %v772 = vpop.f32.mrb[0].mxu0
    %v773 = vadd.f32 %v665, %v772
    %v774 = vpop.f32.mrb[0].mxu0
    %v775 = vpop.f32.mrb[0].mxu0
    %v776 = vadd.f32 %v665, %v775
    %v777 = vpop.f32.mrb[0].mxu0
    %778 = vdwg.mxu0
    %v779 = vmax.f32 %v749, 0.0
    %v780 = vmax.f32 %v752, 0.0
    %v781 = vmax.f32 %v757, 0.0
    %v782 = vmax.f32 %v760, 0.0
    %v783 = vmax.f32 %v765, 0.0
    %v784 = vmax.f32 %v768, 0.0
    %v785 = vmax.f32 %v773, 0.0
    %v786 = vmax.f32 %v776, 0.0
    %v787 = vpack.c.bf16 %v780, %v779
    %v788 = vpack.c.bf16 %v782, %v781
    %v789 = vpack.c.bf16 %v784, %v783
    %v790 = vpack.c.bf16 %v786, %v785
    %v791 = vld [vmem:[#allocation2] sm:$0xf]
    %v792 = vld [vmem:[#allocation2 + $0x4] sm:$0xf]
    %v793 = vld [vmem:[#allocation2 + $0x8] sm:$0xf]
    %v794 = vld [vmem:[#allocation2 + $0xc] sm:$0xf]
    %v795 = vld [vmem:[#allocation2 + $0x10] sm:$0xf]
    %v796 = vld [vmem:[#allocation2 + $0x14] sm:$0xf]
    %v797 = vld [vmem:[#allocation2 + $0x18] sm:$0xf]
    %v798 = vld [vmem:[#allocation2 + $0x1c] sm:$0xf]
    %v799 = vld [vmem:[#allocation2 + $0x20] sm:$0xf]
    %v800 = vld [vmem:[#allocation2 + $0x24] sm:$0xf]
    %v801 = vld [vmem:[#allocation2 + $0x28] sm:$0xf]
    %v802 = vld [vmem:[#allocation2 + $0x2c] sm:$0xf]
    %v803 = vld [vmem:[#allocation2 + $0x30] sm:$0xf]
    %v804 = vld [vmem:[#allocation2 + $0x34] sm:$0xf]
    %v805 = vld [vmem:[#allocation2 + $0x38] sm:$0xf]
    %v806 = vld [vmem:[#allocation2 + $0x3c] sm:$0xf]
    %v807 = vld [vmem:[%s6] sm:$0x1]
    %v808 = vlaneseq
    %v809 = vshrl.u32 %v808, 7
    %v810 = vsub.s32 0, %v809
    %v811 = vrot.slane %v807, %v810
    %v828 = vunpack.c.l.b16 %v791
    %v829 = vunpack.c.l.b16 %v792
    %v830 = vunpack.c.l.b16 %v793
    %v831 = vunpack.c.l.b16 %v794
    %v832 = vunpack.c.l.b16 %v795
    %v833 = vunpack.c.l.b16 %v796
    %v834 = vunpack.c.l.b16 %v797
    %v835 = vunpack.c.l.b16 %v798
    %v836 = vunpack.c.l.b16 %v799
    %v837 = vunpack.c.l.b16 %v800
    %v838 = vunpack.c.l.b16 %v801
    %v839 = vunpack.c.l.b16 %v802
    %v840 = vunpack.c.l.b16 %v803
    %v841 = vunpack.c.l.b16 %v804
    %v842 = vunpack.c.l.b16 %v805
    %v843 = vunpack.c.l.b16 %v806
    %v844 = vpack.c.b16 %v829, %v828
    %v845 = vpack.c.b16 %v831, %v830
    %v846 = vpack.c.b16 %v833, %v832
    %v847 = vpack.c.b16 %v835, %v834
    %v848 = vpack.c.b16 %v837, %v836
    %v849 = vpack.c.b16 %v839, %v838
    %v850 = vpack.c.b16 %v841, %v840
    %v851 = vpack.c.b16 %v843, %v842
    %860 = vmatprep.subr.bf16.mxu0 0
    %861 = vmatpush1.bf16.msra.mxu0 %v844
    %862 = vmatprep.subr.bf16.mxu0 0
    %863 = vmatpush1.bf16.msra.mxu0 %v845
    %864 = vmatprep.subr.bf16.mxu0 0
    %865 = vmatpush1.bf16.msra.mxu0 %v846
    %866 = vmatprep.subr.bf16.mxu0 0
    %867 = vmatpush1.bf16.msra.mxu0 %v847
    %868 = vmatprep.subr.bf16.mxu0 0
    %869 = vmatpush1.bf16.msra.mxu0 %v848
    %870 = vmatprep.subr.bf16.mxu0 0
    %871 = vmatpush1.bf16.msra.mxu0 %v849
    %872 = vmatprep.subr.bf16.mxu0 0
    %873 = vmatpush1.bf16.msra.mxu0 %v850
    %874 = vmatprep.subr.bf16.mxu0 0
    %875 = vmatpush1.bf16.msra.mxu0 %v851
    %876 = vmatprep.subr.bf16.mxu0 0
    %877 = vmatpush1.bf16.msra.mxu0 0
    %878 = vmatprep.subr.bf16.mxu0 0
    %879 = vmatpush1.bf16.msra.mxu0 0
    %880 = vmatprep.subr.bf16.mxu0 0
    %881 = vmatpush1.bf16.msra.mxu0 0
    %882 = vmatprep.subr.bf16.mxu0 0
    %883 = vmatpush1.bf16.msra.mxu0 0
    %884 = vmatprep.subr.bf16.mxu0 0
    %885 = vmatpush1.bf16.msra.mxu0 0
    %886 = vmatprep.subr.bf16.mxu0 0
    %887 = vmatpush1.bf16.msra.mxu0 0
    %888 = vmatprep.subr.bf16.mxu0 0
    %889 = vmatpush1.bf16.msra.mxu0 0
    %890 = vmatprep.subr.bf16.mxu0 0
    %891 = vmatpush1.bf16.msra.mxu0 0
    %892 = vmatprep.mubr.bf16.mxu0 0
    %893 = vmatmul.mubr.bf16.gmra.mrb[0].mxu0 %v787
    %v894 = vpop.f32.mrb[0].mxu0
    %v895 = vadd.f32 %v811, %v894
    %v896 = vpop.f32.mrb[0].mxu0
    %v897 = vpop.f32.mrb[0].mxu0
    %v898 = vadd.f32 %v811, %v897
    %v899 = vpop.f32.mrb[0].mxu0
    %900 = vmatprep.mubr.bf16.mxu0 0
    %901 = vmatmul.mubr.bf16.gmra.mrb[0].mxu0 %v788
    %v902 = vpop.f32.mrb[0].mxu0
    %v903 = vadd.f32 %v811, %v902
    %v904 = vpop.f32.mrb[0].mxu0
    %v905 = vpop.f32.mrb[0].mxu0
    %v906 = vadd.f32 %v811, %v905
    %v907 = vpop.f32.mrb[0].mxu0
    %908 = vmatprep.mubr.bf16.mxu0 0
    %909 = vmatmul.mubr.bf16.gmra.mrb[0].mxu0 %v789
    %v910 = vpop.f32.mrb[0].mxu0
    %v911 = vadd.f32 %v811, %v910
    %v912 = vpop.f32.mrb[0].mxu0
    %v913 = vpop.f32.mrb[0].mxu0
    %v914 = vadd.f32 %v811, %v913
    %v915 = vpop.f32.mrb[0].mxu0
    %916 = vmatprep.mubr.bf16.mxu0 0
    %917 = vmatmul.mubr.bf16.gmra.mrb[0].mxu0 %v790
    %v918 = vpop.f32.mrb[0].mxu0
    %v919 = vadd.f32 %v811, %v918
    %v920 = vpop.f32.mrb[0].mxu0
    %v921 = vpop.f32.mrb[0].mxu0
    %v922 = vadd.f32 %v811, %v921
    %v923 = vpop.f32.mrb[0].mxu0
    %924 = vdwg.mxu0
    %v925 = vmax.f32 %v895, 0.0
    %v926 = vmax.f32 %v898, 0.0
    %v927 = vmax.f32 %v903, 0.0
    %v928 = vmax.f32 %v906, 0.0
    %v929 = vmax.f32 %v911, 0.0
    %v930 = vmax.f32 %v914, 0.0
    %v931 = vmax.f32 %v919, 0.0
    %v932 = vmax.f32 %v922, 0.0
    %v933 = vadd.f32 %v507, %v925
    %v934 = vadd.f32 %v510, %v926
    %v935 = vadd.f32 %v515, %v927
    %v936 = vadd.f32 %v518, %v928
    %v937 = vadd.f32 %v523, %v929
    %v938 = vadd.f32 %v526, %v930
    %v939 = vadd.f32 %v531, %v931
    %v940 = vadd.f32 %v534, %v932
    %941 = vadd.xlane.f32.xlu0 %v933
    %v942 = vpop.xlane.xlu0 %941
    %943 = vadd.xlane.f32.xlu0 %v934
    %v944 = vpop.xlane.xlu0 %943
    %945 = vadd.xlane.f32.xlu0 %v935
    %v946 = vpop.xlane.xlu0 %945
    %947 = vadd.xlane.f32.xlu0 %v936
    %v948 = vpop.xlane.xlu0 %947
    %949 = vadd.xlane.f32.xlu0 %v937
    %v950 = vpop.xlane.xlu0 %949
    %951 = vadd.xlane.f32.xlu0 %v938
    %v952 = vpop.xlane.xlu0 %951
    %953 = vadd.xlane.f32.xlu0 %v939
    %v954 = vpop.xlane.xlu0 %953
    %955 = vadd.xlane.f32.xlu0 %v940
    %v956 = vpop.xlane.xlu0 %955
    %v957 = vmul.f32 %v933, %v933
    %v958 = vmul.f32 %v934, %v934
    %v959 = vmul.f32 %v935, %v935
    %v960 = vmul.f32 %v936, %v936
    %v961 = vmul.f32 %v937, %v937
    %v962 = vmul.f32 %v938, %v938
    %v963 = vmul.f32 %v939, %v939
    %v964 = vmul.f32 %v940, %v940
    %965 = vadd.xlane.f32.xlu0 %v957
    %v966 = vpop.xlane.xlu0 %965
    %967 = vadd.xlane.f32.xlu0 %v958
    %v968 = vpop.xlane.xlu0 %967
    %969 = vadd.xlane.f32.xlu0 %v959
    %v970 = vpop.xlane.xlu0 %969
    %971 = vadd.xlane.f32.xlu0 %v960
    %v972 = vpop.xlane.xlu0 %971
    %973 = vadd.xlane.f32.xlu0 %v961
    %v974 = vpop.xlane.xlu0 %973
    %975 = vadd.xlane.f32.xlu0 %v962
    %v976 = vpop.xlane.xlu0 %975
    %977 = vadd.xlane.f32.xlu0 %v963
    %v978 = vpop.xlane.xlu0 %977
    %979 = vadd.xlane.f32.xlu0 %v964
    %v980 = vpop.xlane.xlu0 %979
    %v981 = vmul.f32 %v942, 0.03125
    %v982 = vmul.f32 %v944, 0.03125
    %v983 = vmul.f32 %v946, 0.03125
    %v984 = vmul.f32 %v948, 0.03125
    %v985 = vmul.f32 %v950, 0.03125
    %v986 = vmul.f32 %v952, 0.03125
    %v987 = vmul.f32 %v954, 0.03125
    %v988 = vmul.f32 %v956, 0.03125
    %v989 = vmul.f32 %v966, 0.03125
    %v990 = vmul.f32 %v968, 0.03125
    %v991 = vmul.f32 %v970, 0.03125
    %v992 = vmul.f32 %v972, 0.03125
    %v993 = vmul.f32 %v974, 0.03125
    %v994 = vmul.f32 %v976, 0.03125
    %v995 = vmul.f32 %v978, 0.03125
    %v996 = vmul.f32 %v980, 0.03125
    %v997 = vmul.f32 %v981, %v981
    %v998 = vmul.f32 %v982, %v982
    %v999 = vmul.f32 %v983, %v983
    %v1000 = vmul.f32 %v984, %v984
    %v1001 = vmul.f32 %v985, %v985
    %v1002 = vmul.f32 %v986, %v986
    %v1003 = vmul.f32 %v987, %v987
    %v1004 = vmul.f32 %v988, %v988
    %v1005 = vsub.f32 %v989, %v997
    %v1006 = vsub.f32 %v990, %v998
    %v1007 = vsub.f32 %v991, %v999
    %v1008 = vsub.f32 %v992, %v1000
    %v1009 = vsub.f32 %v993, %v1001
    %v1010 = vsub.f32 %v994, %v1002
    %v1011 = vsub.f32 %v995, %v1003
    %v1012 = vsub.f32 %v996, %v1004
    %v1013 = vsub.f32 %v933, %v981
    %v1014 = vsub.f32 %v934, %v982
    %v1015 = vsub.f32 %v935, %v983
    %v1016 = vsub.f32 %v936, %v984
    %v1017 = vsub.f32 %v937, %v985
    %v1018 = vsub.f32 %v938, %v986
    %v1019 = vsub.f32 %v939, %v987
    %v1020 = vsub.f32 %v940, %v988
    %v1021 = vadd.f32 %v1005, 1e-05
    %v1022 = vadd.f32 %v1006, 1e-05
    %v1023 = vadd.f32 %v1007, 1e-05
    %v1024 = vadd.f32 %v1008, 1e-05
    %v1025 = vadd.f32 %v1009, 1e-05
    %v1026 = vadd.f32 %v1010, 1e-05
    %v1027 = vadd.f32 %v1011, 1e-05
    %v1028 = vadd.f32 %v1012, 1e-05
    %v1029 = vrsqrt.pop %v1021
    %v1030 = vrsqrt.pop %v1022
    %v1031 = vrsqrt.pop %v1023
    %v1032 = vrsqrt.pop %v1024
    %v1033 = vrsqrt.pop %v1025
    %v1034 = vrsqrt.pop %v1026
    %v1035 = vrsqrt.pop %v1027
    %v1036 = vrsqrt.pop %v1028
    %v1037 = vmul.f32 %v1013, %v1029
    %v1038 = vmul.f32 %v1014, %v1030
    %v1039 = vmul.f32 %v1015, %v1031
    %v1040 = vmul.f32 %v1016, %v1032
    %v1041 = vmul.f32 %v1017, %v1033
    %v1042 = vmul.f32 %v1018, %v1034
    %v1043 = vmul.f32 %v1019, %v1035
    %v1044 = vmul.f32 %v1020, %v1036
    %v1045 = vpack.c.bf16 %v1038, %v1037
    %v1046 = vpack.c.bf16 %v1040, %v1039
    %v1047 = vpack.c.bf16 %v1042, %v1041
    %v1048 = vpack.c.bf16 %v1044, %v1043
    %s1049 = scalar_lea.vmem %s3, 64
    %v1050 = vld [vmem:[%s1049] sm:$0xf]
    %v1051 = vld [vmem:[%s1049 + $0x4] sm:$0xf]
    %v1052 = vld [vmem:[%s1049 + $0x8] sm:$0xf]
    %v1053 = vld [vmem:[%s1049 + $0xc] sm:$0xf]
    %v1054 = vld [vmem:[%s1049 + $0x10] sm:$0xf]
    %v1055 = vld [vmem:[%s1049 + $0x14] sm:$0xf]
    %v1056 = vld [vmem:[%s1049 + $0x18] sm:$0xf]
    %v1057 = vld [vmem:[%s1049 + $0x1c] sm:$0xf]
    %v1058 = vld [vmem:[%s1049 + $0x20] sm:$0xf]
    %v1059 = vld [vmem:[%s1049 + $0x24] sm:$0xf]
    %v1060 = vld [vmem:[%s1049 + $0x28] sm:$0xf]
    %v1061 = vld [vmem:[%s1049 + $0x2c] sm:$0xf]
    %v1062 = vld [vmem:[%s1049 + $0x30] sm:$0xf]
    %v1063 = vld [vmem:[%s1049 + $0x34] sm:$0xf]
    %v1064 = vld [vmem:[%s1049 + $0x38] sm:$0xf]
    %v1065 = vld [vmem:[%s1049 + $0x3c] sm:$0xf]
    %v1066 = vld [vmem:[%s4 + $0x1] sm:$0x1]
    %v1067 = vlaneseq
    %v1068 = vshrl.u32 %v1067, 7
    %v1069 = vsub.s32 0, %v1068
    %v1070 = vrot.slane %v1066, %v1069
    %v1087 = vunpack.c.l.b16 %v1050
    %v1088 = vunpack.c.l.b16 %v1051
    %v1089 = vunpack.c.l.b16 %v1052
    %v1090 = vunpack.c.l.b16 %v1053
    %v1091 = vunpack.c.l.b16 %v1054
    %v1092 = vunpack.c.l.b16 %v1055
    %v1093 = vunpack.c.l.b16 %v1056
    %v1094 = vunpack.c.l.b16 %v1057
    %v1095 = vunpack.c.l.b16 %v1058
    %v1096 = vunpack.c.l.b16 %v1059
    %v1097 = vunpack.c.l.b16 %v1060
    %v1098 = vunpack.c.l.b16 %v1061
    %v1099 = vunpack.c.l.b16 %v1062
    %v1100 = vunpack.c.l.b16 %v1063
    %v1101 = vunpack.c.l.b16 %v1064
    %v1102 = vunpack.c.l.b16 %v1065
    %v1103 = vpack.c.b16 %v1088, %v1087
    %v1104 = vpack.c.b16 %v1090, %v1089
    %v1105 = vpack.c.b16 %v1092, %v1091
    %v1106 = vpack.c.b16 %v1094, %v1093
    %v1107 = vpack.c.b16 %v1096, %v1095
    %v1108 = vpack.c.b16 %v1098, %v1097
    %v1109 = vpack.c.b16 %v1100, %v1099
    %v1110 = vpack.c.b16 %v1102, %v1101
    %1119 = vmatprep.subr.bf16.mxu0 0
    %1120 = vmatpush1.bf16.msra.mxu0 %v1103
    %1121 = vmatprep.subr.bf16.mxu0 0
    %1122 = vmatpush1.bf16.msra.mxu0 %v1104
    %1123 = vmatprep.subr.bf16.mxu0 0
    %1124 = vmatpush1.bf16.msra.mxu0 %v1105
    %1125 = vmatprep.subr.bf16.mxu0 0
    %1126 = vmatpush1.bf16.msra.mxu0 %v1106
    %1127 = vmatprep.subr.bf16.mxu0 0
    %1128 = vmatpush1.bf16.msra.mxu0 %v1107
    %1129 = vmatprep.subr.bf16.mxu0 0
    %1130 = vmatpush1.bf16.msra.mxu0 %v1108
    %1131 = vmatprep.subr.bf16.mxu0 0
    %1132 = vmatpush1.bf16.msra.mxu0 %v1109
    %1133 = vmatprep.subr.bf16.mxu0 0
    %1134 = vmatpush1.bf16.msra.mxu0 %v1110
    %1135 = vmatprep.subr.bf16.mxu0 0
    %1136 = vmatpush1.bf16.msra.mxu0 0
    %1137 = vmatprep.subr.bf16.mxu0 0
    %1138 = vmatpush1.bf16.msra.mxu0 0
    %1139 = vmatprep.subr.bf16.mxu0 0
    %1140 = vmatpush1.bf16.msra.mxu0 0
    %1141 = vmatprep.subr.bf16.mxu0 0
    %1142 = vmatpush1.bf16.msra.mxu0 0
    %1143 = vmatprep.subr.bf16.mxu0 0
    %1144 = vmatpush1.bf16.msra.mxu0 0
    %1145 = vmatprep.subr.bf16.mxu0 0
    %1146 = vmatpush1.bf16.msra.mxu0 0
    %1147 = vmatprep.subr.bf16.mxu0 0
    %1148 = vmatpush1.bf16.msra.mxu0 0
    %1149 = vmatprep.subr.bf16.mxu0 0
    %1150 = vmatpush1.bf16.msra.mxu0 0
    %1151 = vmatprep.mubr.bf16.mxu0 0
    %1152 = vmatmul.mubr.bf16.gmra.mrb[0].mxu0 %v1045
    %v1153 = vpop.f32.mrb[0].mxu0
    %v1154 = vadd.f32 %v1070, %v1153
    %v1155 = vpop.f32.mrb[0].mxu0
    %v1156 = vpop.f32.mrb[0].mxu0
    %v1157 = vadd.f32 %v1070, %v1156
    %v1158 = vpop.f32.mrb[0].mxu0
    %1159 = vmatprep.mubr.bf16.mxu0 0
    %1160 = vmatmul.mubr.bf16.gmra.mrb[0].mxu0 %v1046
    %v1161 = vpop.f32.mrb[0].mxu0
    %v1162 = vadd.f32 %v1070, %v1161
    %v1163 = vpop.f32.mrb[0].mxu0
    %v1164 = vpop.f32.mrb[0].mxu0
    %v1165 = vadd.f32 %v1070, %v1164
    %v1166 = vpop.f32.mrb[0].mxu0
    %1167 = vmatprep.mubr.bf16.mxu0 0
    %1168 = vmatmul.mubr.bf16.gmra.mrb[0].mxu0 %v1047
    %v1169 = vpop.f32.mrb[0].mxu0
    %v1170 = vadd.f32 %v1070, %v1169
    %v1171 = vpop.f32.mrb[0].mxu0
    %v1172 = vpop.f32.mrb[0].mxu0
    %v1173 = vadd.f32 %v1070, %v1172
    %v1174 = vpop.f32.mrb[0].mxu0
    %1175 = vmatprep.mubr.bf16.mxu0 0
    %1176 = vmatmul.mubr.bf16.gmra.mrb[0].mxu0 %v1048
    %v1177 = vpop.f32.mrb[0].mxu0
    %v1178 = vadd.f32 %v1070, %v1177
    %v1179 = vpop.f32.mrb[0].mxu0
    %v1180 = vpop.f32.mrb[0].mxu0
    %v1181 = vadd.f32 %v1070, %v1180
    %v1182 = vpop.f32.mrb[0].mxu0
    %1183 = vdwg.mxu0
    %v1184 = vmax.f32 %v1154, 0.0
    %v1185 = vmax.f32 %v1157, 0.0
    %v1186 = vmax.f32 %v1162, 0.0
    %v1187 = vmax.f32 %v1165, 0.0
    %v1188 = vmax.f32 %v1170, 0.0
    %v1189 = vmax.f32 %v1173, 0.0
    %v1190 = vmax.f32 %v1178, 0.0
    %v1191 = vmax.f32 %v1181, 0.0
    %v1192 = vpack.c.bf16 %v1185, %v1184
    %v1193 = vpack.c.bf16 %v1187, %v1186
    %v1194 = vpack.c.bf16 %v1189, %v1188
    %v1195 = vpack.c.bf16 %v1191, %v1190
    %s1196 = scalar_lea.vmem [#allocation2], 64
    %v1197 = vld [vmem:[%s1196] sm:$0xf]
    %v1198 = vld [vmem:[%s1196 + $0x4] sm:$0xf]
    %v1199 = vld [vmem:[%s1196 + $0x8] sm:$0xf]
    %v1200 = vld [vmem:[%s1196 + $0xc] sm:$0xf]
    %v1201 = vld [vmem:[%s1196 + $0x10] sm:$0xf]
    %v1202 = vld [vmem:[%s1196 + $0x14] sm:$0xf]
    %v1203 = vld [vmem:[%s1196 + $0x18] sm:$0xf]
    %v1204 = vld [vmem:[%s1196 + $0x1c] sm:$0xf]
    %v1205 = vld [vmem:[%s1196 + $0x20] sm:$0xf]
    %v1206 = vld [vmem:[%s1196 + $0x24] sm:$0xf]
    %v1207 = vld [vmem:[%s1196 + $0x28] sm:$0xf]
    %v1208 = vld [vmem:[%s1196 + $0x2c] sm:$0xf]
    %v1209 = vld [vmem:[%s1196 + $0x30] sm:$0xf]
    %v1210 = vld [vmem:[%s1196 + $0x34] sm:$0xf]
    %v1211 = vld [vmem:[%s1196 + $0x38] sm:$0xf]
    %v1212 = vld [vmem:[%s1196 + $0x3c] sm:$0xf]
    %v1213 = vld [vmem:[%s6 + $0x1] sm:$0x1]
    %v1214 = vlaneseq
    %v1215 = vshrl.u32 %v1214, 7
    %v1216 = vsub.s32 0, %v1215
    %v1217 = vrot.slane %v1213, %v1216
    %v1234 = vunpack.c.l.b16 %v1197
    %v1235 = vunpack.c.l.b16 %v1198
    %v1236 = vunpack.c.l.b16 %v1199
    %v1237 = vunpack.c.l.b16 %v1200
    %v1238 = vunpack.c.l.b16 %v1201
    %v1239 = vunpack.c.l.b16 %v1202
    %v1240 = vunpack.c.l.b16 %v1203
    %v1241 = vunpack.c.l.b16 %v1204
    %v1242 = vunpack.c.l.b16 %v1205
    %v1243 = vunpack.c.l.b16 %v1206
    %v1244 = vunpack.c.l.b16 %v1207
    %v1245 = vunpack.c.l.b16 %v1208
    %v1246 = vunpack.c.l.b16 %v1209
    %v1247 = vunpack.c.l.b16 %v1210
    %v1248 = vunpack.c.l.b16 %v1211
    %v1249 = vunpack.c.l.b16 %v1212
    %v1250 = vpack.c.b16 %v1235, %v1234
    %v1251 = vpack.c.b16 %v1237, %v1236
    %v1252 = vpack.c.b16 %v1239, %v1238
    %v1253 = vpack.c.b16 %v1241, %v1240
    %v1254 = vpack.c.b16 %v1243, %v1242
    %v1255 = vpack.c.b16 %v1245, %v1244
    %v1256 = vpack.c.b16 %v1247, %v1246
    %v1257 = vpack.c.b16 %v1249, %v1248
    %1266 = vmatprep.subr.bf16.mxu0 0
    %1267 = vmatpush1.bf16.msra.mxu0 %v1250
    %1268 = vmatprep.subr.bf16.mxu0 0
    %1269 = vmatpush1.bf16.msra.mxu0 %v1251
    %1270 = vmatprep.subr.bf16.mxu0 0
    %1271 = vmatpush1.bf16.msra.mxu0 %v1252
    %1272 = vmatprep.subr.bf16.mxu0 0
    %1273 = vmatpush1.bf16.msra.mxu0 %v1253
    %1274 = vmatprep.subr.bf16.mxu0 0
    %1275 = vmatpush1.bf16.msra.mxu0 %v1254
    %1276 = vmatprep.subr.bf16.mxu0 0
    %1277 = vmatpush1.bf16.msra.mxu0 %v1255
    %1278 = vmatprep.subr.bf16.mxu0 0
    %1279 = vmatpush1.bf16.msra.mxu0 %v1256
    %1280 = vmatprep.subr.bf16.mxu0 0
    %1281 = vmatpush1.bf16.msra.mxu0 %v1257
    %1282 = vmatprep.subr.bf16.mxu0 0
    %1283 = vmatpush1.bf16.msra.mxu0 0
    %1284 = vmatprep.subr.bf16.mxu0 0
    %1285 = vmatpush1.bf16.msra.mxu0 0
    %1286 = vmatprep.subr.bf16.mxu0 0
    %1287 = vmatpush1.bf16.msra.mxu0 0
    %1288 = vmatprep.subr.bf16.mxu0 0
    %1289 = vmatpush1.bf16.msra.mxu0 0
    %1290 = vmatprep.subr.bf16.mxu0 0
    %1291 = vmatpush1.bf16.msra.mxu0 0
    %1292 = vmatprep.subr.bf16.mxu0 0
    %1293 = vmatpush1.bf16.msra.mxu0 0
    %1294 = vmatprep.subr.bf16.mxu0 0
    %1295 = vmatpush1.bf16.msra.mxu0 0
    %1296 = vmatprep.subr.bf16.mxu0 0
    %1297 = vmatpush1.bf16.msra.mxu0 0
    %1298 = vmatprep.mubr.bf16.mxu0 0
    %1299 = vmatmul.mubr.bf16.gmra.mrb[0].mxu0 %v1192
    %v1300 = vpop.f32.mrb[0].mxu0
    %v1301 = vadd.f32 %v1217, %v1300
    %v1302 = vpop.f32.mrb[0].mxu0
    %v1303 = vpop.f32.mrb[0].mxu0
    %v1304 = vadd.f32 %v1217, %v1303
    %v1305 = vpop.f32.mrb[0].mxu0
    %1306 = vmatprep.mubr.bf16.mxu0 0
    %1307 = vmatmul.mubr.bf16.gmra.mrb[0].mxu0 %v1193
    %v1308 = vpop.f32.mrb[0].mxu0
    %v1309 = vadd.f32 %v1217, %v1308
    %v1310 = vpop.f32.mrb[0].mxu0
    %v1311 = vpop.f32.mrb[0].mxu0
    %v1312 = vadd.f32 %v1217, %v1311
    %v1313 = vpop.f32.mrb[0].mxu0
    %1314 = vmatprep.mubr.bf16.mxu0 0
    %1315 = vmatmul.mubr.bf16.gmra.mrb[0].mxu0 %v1194
    %v1316 = vpop.f32.mrb[0].mxu0
    %v1317 = vadd.f32 %v1217, %v1316
    %v1318 = vpop.f32.mrb[0].mxu0
    %v1319 = vpop.f32.mrb[0].mxu0
    %v1320 = vadd.f32 %v1217, %v1319
    %v1321 = vpop.f32.mrb[0].mxu0
    %1322 = vmatprep.mubr.bf16.mxu0 0
    %1323 = vmatmul.mubr.bf16.gmra.mrb[0].mxu0 %v1195
    %v1324 = vpop.f32.mrb[0].mxu0
    %v1325 = vadd.f32 %v1217, %v1324
    %v1326 = vpop.f32.mrb[0].mxu0
    %v1327 = vpop.f32.mrb[0].mxu0
    %v1328 = vadd.f32 %v1217, %v1327
    %v1329 = vpop.f32.mrb[0].mxu0
    %1330 = vdwg.mxu0
    %v1331 = vmax.f32 %v1301, 0.0
    %v1332 = vmax.f32 %v1304, 0.0
    %v1333 = vmax.f32 %v1309, 0.0
    %v1334 = vmax.f32 %v1312, 0.0
    %v1335 = vmax.f32 %v1317, 0.0
    %v1336 = vmax.f32 %v1320, 0.0
    %v1337 = vmax.f32 %v1325, 0.0
    %v1338 = vmax.f32 %v1328, 0.0
    %v1339 = vadd.f32 %v933, %v1331
    %v1340 = vadd.f32 %v934, %v1332
    %v1341 = vadd.f32 %v935, %v1333
    %v1342 = vadd.f32 %v936, %v1334
    %v1343 = vadd.f32 %v937, %v1335
    %v1344 = vadd.f32 %v938, %v1336
    %v1345 = vadd.f32 %v939, %v1337
    %v1346 = vadd.f32 %v940, %v1338
    %v1347 = vpack.c.bf16 %v1340, %v1339
    %v1348 = vpack.c.bf16 %v1342, %v1341
    %v1349 = vpack.c.bf16 %v1344, %v1343
    %v1350 = vpack.c.bf16 %v1346, %v1345
    %v1351 = vld [vmem:[%s7] sm:$0xf]
    %v1352 = vld [vmem:[%s7 + $0x4] sm:$0xf]
    %v1353 = vld [vmem:[%s7 + $0x8] sm:$0xf]
    %v1354 = vld [vmem:[%s7 + $0xc] sm:$0xf]
    %v1355 = vld [vmem:[%s7 + $0x10] sm:$0xf]
    %v1356 = vld [vmem:[%s7 + $0x14] sm:$0xf]
    %v1357 = vld [vmem:[%s7 + $0x18] sm:$0xf]
    %v1358 = vld [vmem:[%s7 + $0x1c] sm:$0xf]
    %v1359 = vld [vmem:[%s7 + $0x20] sm:$0xf]
    %v1360 = vld [vmem:[%s7 + $0x24] sm:$0xf]
    %v1361 = vld [vmem:[%s7 + $0x28] sm:$0xf]
    %v1362 = vld [vmem:[%s7 + $0x2c] sm:$0xf]
    %v1363 = vld [vmem:[%s7 + $0x30] sm:$0xf]
    %v1364 = vld [vmem:[%s7 + $0x34] sm:$0xf]
    %v1365 = vld [vmem:[%s7 + $0x38] sm:$0xf]
    %v1366 = vld [vmem:[%s7 + $0x3c] sm:$0xf]
    %v1367 = vld [vmem:[%s8] sm:$0x1]
    %v1369 = vlaneseq
    %v1370 = vshrl.u32 %v1369, 7
    %v1371 = vsub.s32 0, %v1370
    %v1372 = vrot.slane %v1367, %v1371
    %v1390 = vunpack.c.l.b16 %v1351
    %v1391 = vunpack.c.l.b16 %v1352
    %v1392 = vunpack.c.l.b16 %v1353
    %v1393 = vunpack.c.l.b16 %v1354
    %v1394 = vunpack.c.l.b16 %v1355
    %v1395 = vunpack.c.l.b16 %v1356
    %v1396 = vunpack.c.l.b16 %v1357
    %v1397 = vunpack.c.l.b16 %v1358
    %v1398 = vunpack.c.l.b16 %v1359
    %v1399 = vunpack.c.l.b16 %v1360
    %v1400 = vunpack.c.l.b16 %v1361
    %v1401 = vunpack.c.l.b16 %v1362
    %v1402 = vunpack.c.l.b16 %v1363
    %v1403 = vunpack.c.l.b16 %v1364
    %v1404 = vunpack.c.l.b16 %v1365
    %v1405 = vunpack.c.l.b16 %v1366
    %v1406 = vpack.c.b16 %v1391, %v1390
    %v1407 = vpack.c.b16 %v1393, %v1392
    %v1408 = vpack.c.b16 %v1395, %v1394
    %v1409 = vpack.c.b16 %v1397, %v1396
    %v1410 = vpack.c.b16 %v1399, %v1398
    %v1411 = vpack.c.b16 %v1401, %v1400
    %v1412 = vpack.c.b16 %v1403, %v1402
    %v1413 = vpack.c.b16 %v1405, %v1404
    %1422 = vmatprep.subr.bf16.mxu0 0
    %1423 = vmatpush1.bf16.msra.mxu0 %v1406
    %1424 = vmatprep.subr.bf16.mxu0 0
    %1425 = vmatpush1.bf16.msra.mxu0 %v1407
    %1426 = vmatprep.subr.bf16.mxu0 0
    %1427 = vmatpush1.bf16.msra.mxu0 %v1408
    %1428 = vmatprep.subr.bf16.mxu0 0
    %1429 = vmatpush1.bf16.msra.mxu0 %v1409
    %1430 = vmatprep.subr.bf16.mxu0 0
    %1431 = vmatpush1.bf16.msra.mxu0 %v1410
    %1432 = vmatprep.subr.bf16.mxu0 0
    %1433 = vmatpush1.bf16.msra.mxu0 %v1411
    %1434 = vmatprep.subr.bf16.mxu0 0
    %1435 = vmatpush1.bf16.msra.mxu0 %v1412
    %1436 = vmatprep.subr.bf16.mxu0 0
    %1437 = vmatpush1.bf16.msra.mxu0 %v1413
    %1438 = vmatprep.subr.bf16.mxu0 0
    %1439 = vmatpush1.bf16.msra.mxu0 0
    %1440 = vmatprep.subr.bf16.mxu0 0
    %1441 = vmatpush1.bf16.msra.mxu0 0
    %1442 = vmatprep.subr.bf16.mxu0 0
    %1443 = vmatpush1.bf16.msra.mxu0 0
    %1444 = vmatprep.subr.bf16.mxu0 0
    %1445 = vmatpush1.bf16.msra.mxu0 0
    %1446 = vmatprep.subr.bf16.mxu0 0
    %1447 = vmatpush1.bf16.msra.mxu0 0
    %1448 = vmatprep.subr.bf16.mxu0 0
    %1449 = vmatpush1.bf16.msra.mxu0 0
    %1450 = vmatprep.subr.bf16.mxu0 0
    %1451 = vmatpush1.bf16.msra.mxu0 0
    %1452 = vmatprep.subr.bf16.mxu0 0
    %1453 = vmatpush1.bf16.msra.mxu0 0
    %1454 = vmatprep.mubr.bf16.mxu0 0
    %1455 = vmatmul.mubr.bf16.gmra.mrb[0].mxu0 %v1347
    %v1456 = vpop.f32.mrb[0].mxu0
    %v1457 = vadd.f32 %v1372, %v1456
    %v1458 = vpop.f32.mrb[0].mxu0
    %v1459 = vpop.f32.mrb[0].mxu0
    %v1460 = vadd.f32 %v1372, %v1459
    %v1461 = vpop.f32.mrb[0].mxu0
    %1462 = vmatprep.mubr.bf16.mxu0 0
    %1463 = vmatmul.mubr.bf16.gmra.mrb[0].mxu0 %v1348
    %v1464 = vpop.f32.mrb[0].mxu0
    %v1465 = vadd.f32 %v1372, %v1464
    %v1466 = vpop.f32.mrb[0].mxu0
    %v1467 = vpop.f32.mrb[0].mxu0
    %v1468 = vadd.f32 %v1372, %v1467
    %v1469 = vpop.f32.mrb[0].mxu0
    %1470 = vmatprep.mubr.bf16.mxu0 0
    %1471 = vmatmul.mubr.bf16.gmra.mrb[0].mxu0 %v1349
    %v1472 = vpop.f32.mrb[0].mxu0
    %v1473 = vadd.f32 %v1372, %v1472
    %v1474 = vpop.f32.mrb[0].mxu0
    %v1475 = vpop.f32.mrb[0].mxu0
    %v1476 = vadd.f32 %v1372, %v1475
    %v1477 = vpop.f32.mrb[0].mxu0
    %1478 = vmatprep.mubr.bf16.mxu0 0
    %1479 = vmatmul.mubr.bf16.gmra.mrb[0].mxu0 %v1350
    %v1480 = vpop.f32.mrb[0].mxu0
    %v1481 = vadd.f32 %v1372, %v1480
    %v1482 = vpop.f32.mrb[0].mxu0
    %v1483 = vpop.f32.mrb[0].mxu0
    %v1484 = vadd.f32 %v1372, %v1483
    %v1485 = vpop.f32.mrb[0].mxu0
    %1486 = vdwg.mxu0
    %vm1487 = vcmask 64512
    %1488 = vst.msk [vmem:[%s9] sm:$0xff] %vm1487, %v1457
    %1489 = vst.msk [vmem:[%s9 + $0x8] sm:$0xff] %vm1487, %v1460
    %1490 = vst.msk [vmem:[%s9 + $0x10] sm:$0xff] %vm1487, %v1465
    %1491 = vst.msk [vmem:[%s9 + $0x18] sm:$0xff] %vm1487, %v1468
    %1492 = vst.msk [vmem:[%s9 + $0x20] sm:$0xff] %vm1487, %v1473
    %1493 = vst.msk [vmem:[%s9 + $0x28] sm:$0xff] %vm1487, %v1476
    %1494 = vst.msk [vmem:[%s9 + $0x30] sm:$0xff] %vm1487, %v1481
    %1495 = vst.msk [vmem:[%s9 + $0x38] sm:$0xff] %vm1487, %v1484
    // Predicated region
    $region42: #{tpu_custom_call.1} parent=1 // pred_check
      _
    $region43: #{tpu_custom_call.1} parent=1 // pred_check_branch
      %1497 = sbr.rel (0) target = $region45
    $region44: #{tpu_custom_call.1} parent=1 // pred_region
      _
    $region45: #{tpu_custom_call.1} parent=1 // pred_fallthru
      _
    // Predicated region
    $region46: #{tpu_custom_call.1} parent=1 // pred_check
      _
    $region47: #{tpu_custom_call.1} parent=1 // pred_check_branch
      %1499 = sbr.rel (0) target = $region49
    $region48: #{tpu_custom_call.1} parent=1 // pred_region
      _
    $region49: #{tpu_custom_call.1} parent=1 // pred_fallthru
      _
    %1500 = vsyncpa [#allocation3], 1

</llo_original>
